<compile_context>
chip_gen: v7x
topology: tpu7x:2x2x1
jax: 0.10.0
libtpu: 0.0.40
codegen_flags: <defaults>
</compile_context>

<pallas_src>
import functools

import jax
import jax.numpy as jnp
from jax import lax
from jax.experimental import pallas as pl
from jax.experimental.pallas import tpu as pltpu


def _attention_kernel(x_ref, wq_ref, wk_ref, wv_ref, wo_ref, bias_ref, o_ref,
                      *, heads, scale):
    """Fused multi-head attention for one (b*m) batch element.

    x_ref            : (n, dim)
    wq/wk/wv_ref     : (heads, dim, d)   per-head projection weights
    wo_ref           : (heads, d, dim)   per-head output-projection weights
    bias_ref         : (heads, n, n)     additive attention bias
    o_ref            : (n, dim)
    """
    x = x_ref[...].astype(jnp.float32)                 # (n, dim)
    acc = jnp.zeros(o_ref.shape, jnp.float32)          # (n, dim)

    # contract the head dim of q and k without materializing a transpose
    qk_dims = (((1,), (1,)), ((), ()))

    for h in range(heads):                             # static unroll
        wq = wq_ref[h].astype(jnp.float32)             # (dim, d)
        wk = wk_ref[h].astype(jnp.float32)
        wv = wv_ref[h].astype(jnp.float32)
        wo = wo_ref[h].astype(jnp.float32)             # (d, dim)

        q = jnp.dot(x, wq, preferred_element_type=jnp.float32) * scale   # (n, d)
        k = jnp.dot(x, wk, preferred_element_type=jnp.float32)           # (n, d)
        v = jnp.dot(x, wv, preferred_element_type=jnp.float32)           # (n, d)

        s = lax.dot_general(q, k, qk_dims,
                            preferred_element_type=jnp.float32)          # (n, n)
        s = s + bias_ref[h].astype(jnp.float32)
        s = s - jnp.max(s, axis=-1, keepdims=True)
        p = jnp.exp(s)
        p = p / jnp.sum(p, axis=-1, keepdims=True)

        o = jnp.dot(p, v, preferred_element_type=jnp.float32)            # (n, d)
        acc = acc + jnp.dot(o, wo, preferred_element_type=jnp.float32)   # (n, dim)

    o_ref[...] = acc.astype(o_ref.dtype)


def attention_pallas(x, w_qkv, w_out, pos_bias=None, *, heads=4, dim_head=32):
    """Forward of the PyTorch `Attention` module.

    x        : (b, m, n, dim)
    w_qkv    : (3*heads*dim_head, dim)   -- nn.Linear(dim, 3*hidden, bias=False).weight
    w_out    : (dim, heads*dim_head)     -- nn.Linear(hidden, dim, bias=False).weight
    pos_bias : None, a (heads, n, n) additive bias, or a 4-D tensor.  The
               reference's 4-D branch mean-reduces to a per-(head, row)
               constant that cancels inside softmax, i.e. it is equivalent to
               a zero bias.
    """
    b, m, n, dim = x.shape
    h, d = heads, dim_head
    hidden = h * d
    scale = float(d) ** -0.5

    # Per-head weight slabs (tiny, one-time; no HBM pass over activations).
    wq = jnp.transpose(w_qkv[0 * hidden:1 * hidden].reshape(h, d, dim), (0, 2, 1))
    wk = jnp.transpose(w_qkv[1 * hidden:2 * hidden].reshape(h, d, dim), (0, 2, 1))
    wv = jnp.transpose(w_qkv[2 * hidden:3 * hidden].reshape(h, d, dim), (0, 2, 1))
    wo = jnp.transpose(w_out, (1, 0)).reshape(h, d, dim)

    if pos_bias is None or pos_bias.ndim == 4:
        # 4-D branch is a softmax no-op (constant over the key axis).
        bias = jnp.zeros((h, n, n), x.dtype)
    else:
        bias = jnp.broadcast_to(pos_bias, (h, n, n)).astype(x.dtype)

    x2 = x.reshape(b * m, n, dim)   # contiguous reshape, no transpose / pad

    kernel = functools.partial(_attention_kernel, heads=h, scale=scale)
    out2 = pl.pallas_call(
        kernel,
        out_shape=jax.ShapeDtypeStruct((b * m, n, dim), x.dtype),
        grid_spec=pltpu.PrefetchScalarGridSpec(
            num_scalar_prefetch=0,
            grid=(b * m,),
            in_specs=[
                pl.BlockSpec((None, n, dim), lambda i: (i, 0, 0)),   # x
                pl.BlockSpec((h, dim, d), lambda i: (0, 0, 0)),      # wq
                pl.BlockSpec((h, dim, d), lambda i: (0, 0, 0)),      # wk
                pl.BlockSpec((h, dim, d), lambda i: (0, 0, 0)),      # wv
                pl.BlockSpec((h, d, dim), lambda i: (0, 0, 0)),      # wo
                pl.BlockSpec((h, n, n), lambda i: (0, 0, 0)),        # bias
            ],
            out_specs=pl.BlockSpec((None, n, dim), lambda i: (i, 0, 0)),
        ),
        compiler_params=pltpu.CompilerParams(
            dimension_semantics=("parallel",),
        ),
    )(x2, wq, wk, wv, wo, bias)

    return out2.reshape(b, m, n, dim)


def _reference(x, w_qkv, w_out, pos_bias, heads, dim_head):
    """Pure-JAX mirror of the PyTorch forward (rotary_emb=None path)."""
    b, m, n, dim = x.shape
    h, d = heads, dim_head
    hidden = h * d
    prec = lax.Precision.HIGHEST

    qkv = jnp.einsum('bmnc,oc->bmno', x, w_qkv, precision=prec)
    q, k, v = jnp.split(qkv, 3, axis=-1)

    def to_heads(t):
        return jnp.transpose(t.reshape(b * m, n, h, d), (0, 2, 1, 3))

    q, k, v = map(to_heads, (q, k, v))
    q = q * (float(d) ** -0.5)
    sim = jnp.einsum('bhid,bhjd->bhij', q, k, precision=prec)
    if pos_bias is not None:
        sim = sim + pos_bias[None]
    sim = sim - jnp.max(sim, axis=-1, keepdims=True)
    attn = jax.nn.softmax(sim, axis=-1)
    o = jnp.einsum('bhij,bhjd->bhid', attn, v, precision=prec)
    o = jnp.transpose(o, (0, 2, 1, 3)).reshape(b, m, n, hidden)
    return jnp.einsum('bmnh,dh->bmnd', o, w_out, precision=prec)


if __name__ == "__main__":
    key = jax.random.PRNGKey(0)
    b, m, n, dim = 2, 4, 8, 32          # small shapes consistent with the module
    heads, dim_head = 4, 32             # module defaults -> hidden = 128
    hidden = heads * dim_head

    kx, kq, ko, kb = jax.random.split(key, 4)
    x = jax.random.normal(kx, (b, m, n, dim), dtype=jnp.float32)
    w_qkv = jax.random.normal(kq, (3 * hidden, dim), dtype=jnp.float32) * (dim ** -0.5)
    w_out = jax.random.normal(ko, (dim, hidden), dtype=jnp.float32) * (hidden ** -0.5)
    pos_bias = jax.random.normal(kb, (heads, n, n), dtype=jnp.float32)

    out = attention_pallas(x, w_qkv, w_out, pos_bias, heads=heads, dim_head=dim_head)
    out = jax.block_until_ready(out)

    ref = _reference(x, w_qkv, w_out, pos_bias, heads, dim_head)
    assert out.shape == ref.shape
    err = float(jnp.max(jnp.abs(out - ref)))
    assert jnp.allclose(out, ref, atol=1e-3, rtol=1e-3), f"max abs err {err}"

    print("KERNEL_OK")
</pallas_src>

<mosaic_0001>
module attributes {stable_mosaic.version = 11 : i64} {
  func.func @_attention_kernel(%arg0: i32, %arg1: memref<1x8x32xf32, #tpu.memory_space<vmem>>, %arg2: memref<4x32x32xf32, #tpu.memory_space<vmem>>, %arg3: memref<4x32x32xf32, #tpu.memory_space<vmem>>, %arg4: memref<4x32x32xf32, #tpu.memory_space<vmem>>, %arg5: memref<4x32x32xf32, #tpu.memory_space<vmem>>, %arg6: memref<4x8x8xf32, #tpu.memory_space<vmem>>, %arg7: memref<1x8x32xf32, #tpu.memory_space<vmem>>) attributes {dimension_semantics = [#tpu.dimension_semantics<parallel>], iteration_bounds = array<i64: 8>, scalar_prefetch = 0 : i64, scratch_operands = 0 : i64, tpu.core_type = #tpu.core_type<tc>, window_params = [{transform_indices = @transform_0, window_bounds = array<i64: 1, 8, 32>}, {pipeline_mode = #tpu.pipeline_mode<synchronous>, transform_indices = @transform_1, window_bounds = array<i64: 4, 32, 32>}, {pipeline_mode = #tpu.pipeline_mode<synchronous>, transform_indices = @transform_2, window_bounds = array<i64: 4, 32, 32>}, {pipeline_mode = #tpu.pipeline_mode<synchronous>, transform_indices = @transform_3, window_bounds = array<i64: 4, 32, 32>}, {pipeline_mode = #tpu.pipeline_mode<synchronous>, transform_indices = @transform_4, window_bounds = array<i64: 4, 32, 32>}, {pipeline_mode = #tpu.pipeline_mode<synchronous>, transform_indices = @transform_5, window_bounds = array<i64: 4, 8, 8>}, {transform_indices = @transform_6, window_bounds = array<i64: 1, 8, 32>}]} {
    %c0 = arith.constant 0 : index
    %c0_0 = arith.constant 0 : index
    %c0_1 = arith.constant 0 : index
    %0 = vector.load %arg1[%c0, %c0_0, %c0_1] : memref<1x8x32xf32, #tpu.memory_space<vmem>>, vector<1x8x32xf32>
    %1 = vector.shape_cast %0 : vector<1x8x32xf32> to vector<8x32xf32>
    %cst = arith.constant 0.000000e+00 : f32
    %2 = vector.broadcast %cst : f32 to vector<8x32xf32>
    %c0_2 = arith.constant 0 : index
    %c0_3 = arith.constant 0 : index
    %c0_4 = arith.constant 0 : index
    %3 = vector.load %arg2[%c0_2, %c0_3, %c0_4] : memref<4x32x32xf32, #tpu.memory_space<vmem>>, vector<1x32x32xf32>
    %4 = vector.shape_cast %3 : vector<1x32x32xf32> to vector<32x32xf32>
    %c0_5 = arith.constant 0 : index
    %c0_6 = arith.constant 0 : index
    %c0_7 = arith.constant 0 : index
    %5 = vector.load %arg3[%c0_5, %c0_6, %c0_7] : memref<4x32x32xf32, #tpu.memory_space<vmem>>, vector<1x32x32xf32>
    %6 = vector.shape_cast %5 : vector<1x32x32xf32> to vector<32x32xf32>
    %c0_8 = arith.constant 0 : index
    %c0_9 = arith.constant 0 : index
    %c0_10 = arith.constant 0 : index
    %7 = vector.load %arg4[%c0_8, %c0_9, %c0_10] : memref<4x32x32xf32, #tpu.memory_space<vmem>>, vector<1x32x32xf32>
    %8 = vector.shape_cast %7 : vector<1x32x32xf32> to vector<32x32xf32>
    %c0_11 = arith.constant 0 : index
    %c0_12 = arith.constant 0 : index
    %c0_13 = arith.constant 0 : index
    %9 = vector.load %arg5[%c0_11, %c0_12, %c0_13] : memref<4x32x32xf32, #tpu.memory_space<vmem>>, vector<1x32x32xf32>
    %10 = vector.shape_cast %9 : vector<1x32x32xf32> to vector<32x32xf32>
    %cst_14 = arith.constant dense<0.000000e+00> : vector<8x32xf32>
    %11 = tpu.matmul %1, %4, %cst_14 {dimension_numbers = #tpu.dot_dimension_numbers<[1], [0], [0], [1], [0, 0, 1, 1], [], []>} : vector<8x32xf32>, vector<32x32xf32>, vector<8x32xf32> -> vector<8x32xf32>
    %cst_15 = arith.constant 0.176776692 : f32
    %12 = vector.broadcast %cst_15 : f32 to vector<8x32xf32>
    %13 = arith.mulf %11, %12 : vector<8x32xf32>
    %cst_16 = arith.constant dense<0.000000e+00> : vector<8x32xf32>
    %14 = tpu.matmul %1, %6, %cst_16 {dimension_numbers = #tpu.dot_dimension_numbers<[1], [0], [0], [1], [0, 0, 1, 1], [], []>} : vector<8x32xf32>, vector<32x32xf32>, vector<8x32xf32> -> vector<8x32xf32>
    %cst_17 = arith.constant dense<0.000000e+00> : vector<8x32xf32>
    %15 = tpu.matmul %1, %8, %cst_17 {dimension_numbers = #tpu.dot_dimension_numbers<[1], [0], [0], [1], [0, 0, 1, 1], [], []>} : vector<8x32xf32>, vector<32x32xf32>, vector<8x32xf32> -> vector<8x32xf32>
    %cst_18 = arith.constant dense<0.000000e+00> : vector<8x8xf32>
    %16 = tpu.matmul %13, %14, %cst_18 {dimension_numbers = #tpu.dot_dimension_numbers<[1], [1], [0], [0], [0, 0, 1, 0], [], []>} : vector<8x32xf32>, vector<8x32xf32>, vector<8x8xf32> -> vector<8x8xf32>
    %c0_19 = arith.constant 0 : index
    %c0_20 = arith.constant 0 : index
    %c0_21 = arith.constant 0 : index
    %17 = vector.load %arg6[%c0_19, %c0_20, %c0_21] : memref<4x8x8xf32, #tpu.memory_space<vmem>>, vector<1x8x8xf32>
    %18 = vector.shape_cast %17 : vector<1x8x8xf32> to vector<8x8xf32>
    %19 = arith.addf %16, %18 : vector<8x8xf32>
    %cst_22 = arith.constant dense<0xFF800000> : vector<8xf32>
    %20 = vector.multi_reduction <maximumf>, %19, %cst_22 [1] : vector<8x8xf32> to vector<8xf32>
    %21 = vector.shape_cast %20 : vector<8xf32> to vector<8x1xf32>
    %22 = vector.broadcast %21 : vector<8x1xf32> to vector<8x8xf32>
    %23 = arith.subf %19, %22 : vector<8x8xf32>
    %24 = math.exp %23 : vector<8x8xf32>
    %cst_23 = arith.constant dense<0.000000e+00> : vector<8xf32>
    %25 = vector.multi_reduction <add>, %24, %cst_23 [1] : vector<8x8xf32> to vector<8xf32>
    %26 = vector.shape_cast %25 : vector<8xf32> to vector<8x1xf32>
    %27 = vector.broadcast %26 : vector<8x1xf32> to vector<8x8xf32>
    %28 = arith.divf %24, %27 : vector<8x8xf32>
    %cst_24 = arith.constant dense<0.000000e+00> : vector<8x32xf32>
    %29 = tpu.matmul %28, %15, %cst_24 {dimension_numbers = #tpu.dot_dimension_numbers<[1], [0], [0], [1], [0, 0, 1, 1], [], []>} : vector<8x8xf32>, vector<8x32xf32>, vector<8x32xf32> -> vector<8x32xf32>
    %cst_25 = arith.constant dense<0.000000e+00> : vector<8x32xf32>
    %30 = tpu.matmul %29, %10, %cst_25 {dimension_numbers = #tpu.dot_dimension_numbers<[1], [0], [0], [1], [0, 0, 1, 1], [], []>} : vector<8x32xf32>, vector<32x32xf32>, vector<8x32xf32> -> vector<8x32xf32>
    %31 = arith.addf %2, %30 : vector<8x32xf32>
    %c1 = arith.constant 1 : index
    %c0_26 = arith.constant 0 : index
    %c0_27 = arith.constant 0 : index
    %32 = vector.load %arg2[%c1, %c0_26, %c0_27] : memref<4x32x32xf32, #tpu.memory_space<vmem>>, vector<1x32x32xf32>
    %33 = vector.shape_cast %32 : vector<1x32x32xf32> to vector<32x32xf32>
    %c1_28 = arith.constant 1 : index
    %c0_29 = arith.constant 0 : index
    %c0_30 = arith.constant 0 : index
    %34 = vector.load %arg3[%c1_28, %c0_29, %c0_30] : memref<4x32x32xf32, #tpu.memory_space<vmem>>, vector<1x32x32xf32>
    %35 = vector.shape_cast %34 : vector<1x32x32xf32> to vector<32x32xf32>
    %c1_31 = arith.constant 1 : index
    %c0_32 = arith.constant 0 : index
    %c0_33 = arith.constant 0 : index
    %36 = vector.load %arg4[%c1_31, %c0_32, %c0_33] : memref<4x32x32xf32, #tpu.memory_space<vmem>>, vector<1x32x32xf32>
    %37 = vector.shape_cast %36 : vector<1x32x32xf32> to vector<32x32xf32>
    %c1_34 = arith.constant 1 : index
    %c0_35 = arith.constant 0 : index
    %c0_36 = arith.constant 0 : index
    %38 = vector.load %arg5[%c1_34, %c0_35, %c0_36] : memref<4x32x32xf32, #tpu.memory_space<vmem>>, vector<1x32x32xf32>
    %39 = vector.shape_cast %38 : vector<1x32x32xf32> to vector<32x32xf32>
    %cst_37 = arith.constant dense<0.000000e+00> : vector<8x32xf32>
    %40 = tpu.matmul %1, %33, %cst_37 {dimension_numbers = #tpu.dot_dimension_numbers<[1], [0], [0], [1], [0, 0, 1, 1], [], []>} : vector<8x32xf32>, vector<32x32xf32>, vector<8x32xf32> -> vector<8x32xf32>
    %cst_38 = arith.constant 0.176776692 : f32
    %41 = vector.broadcast %cst_38 : f32 to vector<8x32xf32>
    %42 = arith.mulf %40, %41 : vector<8x32xf32>
    %cst_39 = arith.constant dense<0.000000e+00> : vector<8x32xf32>
    %43 = tpu.matmul %1, %35, %cst_39 {dimension_numbers = #tpu.dot_dimension_numbers<[1], [0], [0], [1], [0, 0, 1, 1], [], []>} : vector<8x32xf32>, vector<32x32xf32>, vector<8x32xf32> -> vector<8x32xf32>
    %cst_40 = arith.constant dense<0.000000e+00> : vector<8x32xf32>
    %44 = tpu.matmul %1, %37, %cst_40 {dimension_numbers = #tpu.dot_dimension_numbers<[1], [0], [0], [1], [0, 0, 1, 1], [], []>} : vector<8x32xf32>, vector<32x32xf32>, vector<8x32xf32> -> vector<8x32xf32>
    %cst_41 = arith.constant dense<0.000000e+00> : vector<8x8xf32>
    %45 = tpu.matmul %42, %43, %cst_41 {dimension_numbers = #tpu.dot_dimension_numbers<[1], [1], [0], [0], [0, 0, 1, 0], [], []>} : vector<8x32xf32>, vector<8x32xf32>, vector<8x8xf32> -> vector<8x8xf32>
    %c1_42 = arith.constant 1 : index
    %c0_43 = arith.constant 0 : index
    %c0_44 = arith.constant 0 : index
    %46 = vector.load %arg6[%c1_42, %c0_43, %c0_44] : memref<4x8x8xf32, #tpu.memory_space<vmem>>, vector<1x8x8xf32>
    %47 = vector.shape_cast %46 : vector<1x8x8xf32> to vector<8x8xf32>
    %48 = arith.addf %45, %47 : vector<8x8xf32>
    %cst_45 = arith.constant dense<0xFF800000> : vector<8xf32>
    %49 = vector.multi_reduction <maximumf>, %48, %cst_45 [1] : vector<8x8xf32> to vector<8xf32>
    %50 = vector.shape_cast %49 : vector<8xf32> to vector<8x1xf32>
    %51 = vector.broadcast %50 : vector<8x1xf32> to vector<8x8xf32>
    %52 = arith.subf %48, %51 : vector<8x8xf32>
    %53 = math.exp %52 : vector<8x8xf32>
    %cst_46 = arith.constant dense<0.000000e+00> : vector<8xf32>
    %54 = vector.multi_reduction <add>, %53, %cst_46 [1] : vector<8x8xf32> to vector<8xf32>
    %55 = vector.shape_cast %54 : vector<8xf32> to vector<8x1xf32>
    %56 = vector.broadcast %55 : vector<8x1xf32> to vector<8x8xf32>
    %57 = arith.divf %53, %56 : vector<8x8xf32>
    %cst_47 = arith.constant dense<0.000000e+00> : vector<8x32xf32>
    %58 = tpu.matmul %57, %44, %cst_47 {dimension_numbers = #tpu.dot_dimension_numbers<[1], [0], [0], [1], [0, 0, 1, 1], [], []>} : vector<8x8xf32>, vector<8x32xf32>, vector<8x32xf32> -> vector<8x32xf32>
    %cst_48 = arith.constant dense<0.000000e+00> : vector<8x32xf32>
    %59 = tpu.matmul %58, %39, %cst_48 {dimension_numbers = #tpu.dot_dimension_numbers<[1], [0], [0], [1], [0, 0, 1, 1], [], []>} : vector<8x32xf32>, vector<32x32xf32>, vector<8x32xf32> -> vector<8x32xf32>
    %60 = arith.addf %31, %59 : vector<8x32xf32>
    %c2 = arith.constant 2 : index
    %c0_49 = arith.constant 0 : index
    %c0_50 = arith.constant 0 : index
    %61 = vector.load %arg2[%c2, %c0_49, %c0_50] : memref<4x32x32xf32, #tpu.memory_space<vmem>>, vector<1x32x32xf32>
    %62 = vector.shape_cast %61 : vector<1x32x32xf32> to vector<32x32xf32>
    %c2_51 = arith.constant 2 : index
    %c0_52 = arith.constant 0 : index
    %c0_53 = arith.constant 0 : index
    %63 = vector.load %arg3[%c2_51, %c0_52, %c0_53] : memref<4x32x32xf32, #tpu.memory_space<vmem>>, vector<1x32x32xf32>
    %64 = vector.shape_cast %63 : vector<1x32x32xf32> to vector<32x32xf32>
    %c2_54 = arith.constant 2 : index
    %c0_55 = arith.constant 0 : index
    %c0_56 = arith.constant 0 : index
    %65 = vector.load %arg4[%c2_54, %c0_55, %c0_56] : memref<4x32x32xf32, #tpu.memory_space<vmem>>, vector<1x32x32xf32>
    %66 = vector.shape_cast %65 : vector<1x32x32xf32> to vector<32x32xf32>
    %c2_57 = arith.constant 2 : index
    %c0_58 = arith.constant 0 : index
    %c0_59 = arith.constant 0 : index
    %67 = vector.load %arg5[%c2_57, %c0_58, %c0_59] : memref<4x32x32xf32, #tpu.memory_space<vmem>>, vector<1x32x32xf32>
    %68 = vector.shape_cast %67 : vector<1x32x32xf32> to vector<32x32xf32>
    %cst_60 = arith.constant dense<0.000000e+00> : vector<8x32xf32>
    %69 = tpu.matmul %1, %62, %cst_60 {dimension_numbers = #tpu.dot_dimension_numbers<[1], [0], [0], [1], [0, 0, 1, 1], [], []>} : vector<8x32xf32>, vector<32x32xf32>, vector<8x32xf32> -> vector<8x32xf32>
    %cst_61 = arith.constant 0.176776692 : f32
    %70 = vector.broadcast %cst_61 : f32 to vector<8x32xf32>
    %71 = arith.mulf %69, %70 : vector<8x32xf32>
    %cst_62 = arith.constant dense<0.000000e+00> : vector<8x32xf32>
    %72 = tpu.matmul %1, %64, %cst_62 {dimension_numbers = #tpu.dot_dimension_numbers<[1], [0], [0], [1], [0, 0, 1, 1], [], []>} : vector<8x32xf32>, vector<32x32xf32>, vector<8x32xf32> -> vector<8x32xf32>
    %cst_63 = arith.constant dense<0.000000e+00> : vector<8x32xf32>
    %73 = tpu.matmul %1, %66, %cst_63 {dimension_numbers = #tpu.dot_dimension_numbers<[1], [0], [0], [1], [0, 0, 1, 1], [], []>} : vector<8x32xf32>, vector<32x32xf32>, vector<8x32xf32> -> vector<8x32xf32>
    %cst_64 = arith.constant dense<0.000000e+00> : vector<8x8xf32>
    %74 = tpu.matmul %71, %72, %cst_64 {dimension_numbers = #tpu.dot_dimension_numbers<[1], [1], [0], [0], [0, 0, 1, 0], [], []>} : vector<8x32xf32>, vector<8x32xf32>, vector<8x8xf32> -> vector<8x8xf32>
    %c2_65 = arith.constant 2 : index
    %c0_66 = arith.constant 0 : index
    %c0_67 = arith.constant 0 : index
    %75 = vector.load %arg6[%c2_65, %c0_66, %c0_67] : memref<4x8x8xf32, #tpu.memory_space<vmem>>, vector<1x8x8xf32>
    %76 = vector.shape_cast %75 : vector<1x8x8xf32> to vector<8x8xf32>
    %77 = arith.addf %74, %76 : vector<8x8xf32>
    %cst_68 = arith.constant dense<0xFF800000> : vector<8xf32>
    %78 = vector.multi_reduction <maximumf>, %77, %cst_68 [1] : vector<8x8xf32> to vector<8xf32>
    %79 = vector.shape_cast %78 : vector<8xf32> to vector<8x1xf32>
    %80 = vector.broadcast %79 : vector<8x1xf32> to vector<8x8xf32>
    %81 = arith.subf %77, %80 : vector<8x8xf32>
    %82 = math.exp %81 : vector<8x8xf32>
    %cst_69 = arith.constant dense<0.000000e+00> : vector<8xf32>
    %83 = vector.multi_reduction <add>, %82, %cst_69 [1] : vector<8x8xf32> to vector<8xf32>
    %84 = vector.shape_cast %83 : vector<8xf32> to vector<8x1xf32>
    %85 = vector.broadcast %84 : vector<8x1xf32> to vector<8x8xf32>
    %86 = arith.divf %82, %85 : vector<8x8xf32>
    %cst_70 = arith.constant dense<0.000000e+00> : vector<8x32xf32>
    %87 = tpu.matmul %86, %73, %cst_70 {dimension_numbers = #tpu.dot_dimension_numbers<[1], [0], [0], [1], [0, 0, 1, 1], [], []>} : vector<8x8xf32>, vector<8x32xf32>, vector<8x32xf32> -> vector<8x32xf32>
    %cst_71 = arith.constant dense<0.000000e+00> : vector<8x32xf32>
    %88 = tpu.matmul %87, %68, %cst_71 {dimension_numbers = #tpu.dot_dimension_numbers<[1], [0], [0], [1], [0, 0, 1, 1], [], []>} : vector<8x32xf32>, vector<32x32xf32>, vector<8x32xf32> -> vector<8x32xf32>
    %89 = arith.addf %60, %88 : vector<8x32xf32>
    %c3 = arith.constant 3 : index
    %c0_72 = arith.constant 0 : index
    %c0_73 = arith.constant 0 : index
    %90 = vector.load %arg2[%c3, %c0_72, %c0_73] : memref<4x32x32xf32, #tpu.memory_space<vmem>>, vector<1x32x32xf32>
    %91 = vector.shape_cast %90 : vector<1x32x32xf32> to vector<32x32xf32>
    %c3_74 = arith.constant 3 : index
    %c0_75 = arith.constant 0 : index
    %c0_76 = arith.constant 0 : index
    %92 = vector.load %arg3[%c3_74, %c0_75, %c0_76] : memref<4x32x32xf32, #tpu.memory_space<vmem>>, vector<1x32x32xf32>
    %93 = vector.shape_cast %92 : vector<1x32x32xf32> to vector<32x32xf32>
    %c3_77 = arith.constant 3 : index
    %c0_78 = arith.constant 0 : index
    %c0_79 = arith.constant 0 : index
    %94 = vector.load %arg4[%c3_77, %c0_78, %c0_79] : memref<4x32x32xf32, #tpu.memory_space<vmem>>, vector<1x32x32xf32>
    %95 = vector.shape_cast %94 : vector<1x32x32xf32> to vector<32x32xf32>
    %c3_80 = arith.constant 3 : index
    %c0_81 = arith.constant 0 : index
    %c0_82 = arith.constant 0 : index
    %96 = vector.load %arg5[%c3_80, %c0_81, %c0_82] : memref<4x32x32xf32, #tpu.memory_space<vmem>>, vector<1x32x32xf32>
    %97 = vector.shape_cast %96 : vector<1x32x32xf32> to vector<32x32xf32>
    %cst_83 = arith.constant dense<0.000000e+00> : vector<8x32xf32>
    %98 = tpu.matmul %1, %91, %cst_83 {dimension_numbers = #tpu.dot_dimension_numbers<[1], [0], [0], [1], [0, 0, 1, 1], [], []>} : vector<8x32xf32>, vector<32x32xf32>, vector<8x32xf32> -> vector<8x32xf32>
    %cst_84 = arith.constant 0.176776692 : f32
    %99 = vector.broadcast %cst_84 : f32 to vector<8x32xf32>
    %100 = arith.mulf %98, %99 : vector<8x32xf32>
    %cst_85 = arith.constant dense<0.000000e+00> : vector<8x32xf32>
    %101 = tpu.matmul %1, %93, %cst_85 {dimension_numbers = #tpu.dot_dimension_numbers<[1], [0], [0], [1], [0, 0, 1, 1], [], []>} : vector<8x32xf32>, vector<32x32xf32>, vector<8x32xf32> -> vector<8x32xf32>
    %cst_86 = arith.constant dense<0.000000e+00> : vector<8x32xf32>
    %102 = tpu.matmul %1, %95, %cst_86 {dimension_numbers = #tpu.dot_dimension_numbers<[1], [0], [0], [1], [0, 0, 1, 1], [], []>} : vector<8x32xf32>, vector<32x32xf32>, vector<8x32xf32> -> vector<8x32xf32>
    %cst_87 = arith.constant dense<0.000000e+00> : vector<8x8xf32>
    %103 = tpu.matmul %100, %101, %cst_87 {dimension_numbers = #tpu.dot_dimension_numbers<[1], [1], [0], [0], [0, 0, 1, 0], [], []>} : vector<8x32xf32>, vector<8x32xf32>, vector<8x8xf32> -> vector<8x8xf32>
    %c3_88 = arith.constant 3 : index
    %c0_89 = arith.constant 0 : index
    %c0_90 = arith.constant 0 : index
    %104 = vector.load %arg6[%c3_88, %c0_89, %c0_90] : memref<4x8x8xf32, #tpu.memory_space<vmem>>, vector<1x8x8xf32>
    %105 = vector.shape_cast %104 : vector<1x8x8xf32> to vector<8x8xf32>
    %106 = arith.addf %103, %105 : vector<8x8xf32>
    %cst_91 = arith.constant dense<0xFF800000> : vector<8xf32>
    %107 = vector.multi_reduction <maximumf>, %106, %cst_91 [1] : vector<8x8xf32> to vector<8xf32>
    %108 = vector.shape_cast %107 : vector<8xf32> to vector<8x1xf32>
    %109 = vector.broadcast %108 : vector<8x1xf32> to vector<8x8xf32>
    %110 = arith.subf %106, %109 : vector<8x8xf32>
    %111 = math.exp %110 : vector<8x8xf32>
    %cst_92 = arith.constant dense<0.000000e+00> : vector<8xf32>
    %112 = vector.multi_reduction <add>, %111, %cst_92 [1] : vector<8x8xf32> to vector<8xf32>
    %113 = vector.shape_cast %112 : vector<8xf32> to vector<8x1xf32>
    %114 = vector.broadcast %113 : vector<8x1xf32> to vector<8x8xf32>
    %115 = arith.divf %111, %114 : vector<8x8xf32>
    %cst_93 = arith.constant dense<0.000000e+00> : vector<8x32xf32>
    %116 = tpu.matmul %115, %102, %cst_93 {dimension_numbers = #tpu.dot_dimension_numbers<[1], [0], [0], [1], [0, 0, 1, 1], [], []>} : vector<8x8xf32>, vector<8x32xf32>, vector<8x32xf32> -> vector<8x32xf32>
    %cst_94 = arith.constant dense<0.000000e+00> : vector<8x32xf32>
    %117 = tpu.matmul %116, %97, %cst_94 {dimension_numbers = #tpu.dot_dimension_numbers<[1], [0], [0], [1], [0, 0, 1, 1], [], []>} : vector<8x32xf32>, vector<32x32xf32>, vector<8x32xf32> -> vector<8x32xf32>
    %118 = arith.addf %89, %117 : vector<8x32xf32>
    %c0_95 = arith.constant 0 : index
    %c0_96 = arith.constant 0 : index
    %c0_97 = arith.constant 0 : index
    %119 = vector.load %arg7[%c0_95, %c0_96, %c0_97] : memref<1x8x32xf32, #tpu.memory_space<vmem>>, vector<1x8x32xf32>
    %120 = vector.shape_cast %119 : vector<1x8x32xf32> to vector<8x32xf32>
    %121 = vector.shape_cast %118 : vector<8x32xf32> to vector<1x8x32xf32>
    tpu.vector_store %arg7[%c0_95, %c0_96, %c0_97], %121 {strides = array<i32>} : memref<1x8x32xf32, #tpu.memory_space<vmem>>, vector<1x8x32xf32>,
    return
  }
  func.func @transform_0(%arg0: i32) -> (i32, i32, i32) {
    %c0_i32 = arith.constant 0 : i32
    %c0_i32_0 = arith.constant 0 : i32
    %c0_i32_1 = arith.constant 0 : i32
    return %arg0, %c0_i32, %c0_i32_0 : i32, i32, i32
  }
  func.func @transform_1(%arg0: i32) -> (i32, i32, i32) {
    %c0_i32 = arith.constant 0 : i32
    %c0_i32_0 = arith.constant 0 : i32
    %c0_i32_1 = arith.constant 0 : i32
    %c0_i32_2 = arith.constant 0 : i32
    return %c0_i32, %c0_i32_0, %c0_i32_1 : i32, i32, i32
  }
  func.func @transform_2(%arg0: i32) -> (i32, i32, i32) {
    %c0_i32 = arith.constant 0 : i32
    %c0_i32_0 = arith.constant 0 : i32
    %c0_i32_1 = arith.constant 0 : i32
    %c0_i32_2 = arith.constant 0 : i32
    return %c0_i32, %c0_i32_0, %c0_i32_1 : i32, i32, i32
  }
  func.func @transform_3(%arg0: i32) -> (i32, i32, i32) {
    %c0_i32 = arith.constant 0 : i32
    %c0_i32_0 = arith.constant 0 : i32
    %c0_i32_1 = arith.constant 0 : i32
    %c0_i32_2 = arith.constant 0 : i32
    return %c0_i32, %c0_i32_0, %c0_i32_1 : i32, i32, i32
  }
  func.func @transform_4(%arg0: i32) -> (i32, i32, i32) {
    %c0_i32 = arith.constant 0 : i32
    %c0_i32_0 = arith.constant 0 : i32
    %c0_i32_1 = arith.constant 0 : i32
    %c0_i32_2 = arith.constant 0 : i32
    return %c0_i32, %c0_i32_0, %c0_i32_1 : i32, i32, i32
  }
  func.func @transform_5(%arg0: i32) -> (i32, i32, i32) {
    %c0_i32 = arith.constant 0 : i32
    %c0_i32_0 = arith.constant 0 : i32
    %c0_i32_1 = arith.constant 0 : i32
    %c0_i32_2 = arith.constant 0 : i32
    return %c0_i32, %c0_i32_0, %c0_i32_1 : i32, i32, i32
  }
  func.func @transform_6(%arg0: i32) -> (i32, i32, i32) {
    %c0_i32 = arith.constant 0 : i32
    %c0_i32_0 = arith.constant 0 : i32
    %c0_i32_1 = arith.constant 0 : i32
    return %arg0, %c0_i32, %c0_i32_0 : i32, i32, i32
  }
}

</mosaic_0001>

<llo_original>
// kernel: tpu_custom_call.1
$region0: #{tpu_custom_call.1}
  #allocation0 [shape = 'u32[]', space=smem, size = 0x4, offset = 0x4, fixed_abs, tag = 'smem constant byte address 0x4 - core index']
  #allocation1 [shape = 'u32[144,128]{1,0:T(1,128)}', space=vmem, size = 0x12000, scoped, tag = 'internal scratch']
  %s0 = inlined_call_operand.hbm [shape: f32[8,8,32], index: 0, kind: input, shape index: {}]
  %s1 = inlined_call_operand.hbm [shape: f32[4,32,32], index: 1, kind: input, shape index: {}]
  %s2 = inlined_call_operand.hbm [shape: f32[4,32,32], index: 2, kind: input, shape index: {}]
  %s3 = inlined_call_operand.hbm [shape: f32[4,32,32], index: 3, kind: input, shape index: {}]
  %s4 = inlined_call_operand.hbm [shape: f32[4,32,32], index: 4, kind: input, shape index: {}]
  %s5 = inlined_call_operand.hbm [shape: f32[4,8,8], index: 5, kind: input, shape index: {}]
  %s6 = inlined_call_operand.hbm [shape: f32[8,8,32], index: 6, kind: output, shape index: {}]
  %s7 = sld [smem:[#allocation0]]
  $region81: #{tpu_custom_call.1} parent=0
    _
  %s9 = ssub.s32 1, %s7
  %s10 = scalar_select 0, %s9, %s7
  $region1: #{tpu_custom_call.1} parent=0
    #allocation2 [shape = 'u8[8192]{0}', space=vmem, size = 0x2000, scoped, tag = 'input window, operand 0']
    #allocation3 [shape = 's32[2]{0}', space=sflag, size = 0x8, scoped, tag = 'scoped memory for tpu_custom_call.1']
    #allocation4 [shape = 's32[2]{0}', space=sflag, size = 0x8, scoped, tag = 'scoped memory for tpu_custom_call.1']
    #allocation5 [shape = 'u8[65536]{0}', space=vmem, size = 0x10000, scoped, tag = 'input window, operand 1, single buffered']
    #allocation6 [shape = 's32[1]{0}', space=sflag, size = 0x4, scoped, tag = 'scoped memory for tpu_custom_call.1']
    #allocation7 [shape = 'u8[65536]{0}', space=vmem, size = 0x10000, scoped, tag = 'input window, operand 2, single buffered']
    #allocation8 [shape = 'u8[65536]{0}', space=vmem, size = 0x10000, scoped, tag = 'input window, operand 3, single buffered']
    #allocation9 [shape = 's32[1]{0}', space=sflag, size = 0x4, scoped, tag = 'scoped memory for tpu_custom_call.1']
    #allocation10 [shape = 'u8[65536]{0}', space=vmem, size = 0x10000, scoped, tag = 'input window, operand 4, single buffered']
    #allocation11 [shape = 'u8[16384]{0}', space=vmem, size = 0x4000, scoped, tag = 'input window, operand 5, single buffered']
    #allocation12 [shape = 's32[1]{0}', space=sflag, size = 0x4, scoped, tag = 'scoped memory for tpu_custom_call.1']
    #allocation13 [shape = 'u8[8192]{0}', space=vmem, size = 0x2000, scoped, tag = 'output window, operand 0']
    %11 = vsyncpa [#allocation3], 0
    %s12 = scalar_lea.sflag [#allocation3], 1
    %13 = vsyncpa %s12, 0
    %14 = vsyncpa [#allocation6], 0
    %15 = vsyncpa [#allocation9], 0
    %16 = vsyncpa [#allocation12], 0
    %17 = vsyncpa [#allocation4], 0
    %s18 = scalar_lea.sflag [#allocation4], 1
    %19 = vsyncpa %s18, 0
    loop: start=0, step=1, limit=10
    $region2: #{tpu_custom_call.1} parent=1 // loop_pre_header
      _
    $region3: #{tpu_custom_call.1} parent=1 // loop_header
      %s21 = sphi 0, %s25
      %p22 = scmp.ge.s32.totalorder %s21, 10
      %s31 = sphi 0, %s33
      %s34 = sphi 0, %s31
      %s35 = sphi 0, %s34
      %s51 = sphi 0, %s35
      %s55 = sphi 0, %s55
      %s57 = sphi 0, %s55
      %s58 = sphi 0, %s57
      %s72 = sphi 0, %s58
      %s76 = sphi 0, %s76
      %s78 = sphi 0, %s76
      %s79 = sphi 0, %s78
      %s93 = sphi 0, %s79
      %s97 = sphi 0, %s97
      %s99 = sphi 0, %s97
      %s100 = sphi 0, %s99
      %s114 = sphi 0, %s100
      %s118 = sphi 0, %s118
      %s120 = sphi 0, %s118
      %s121 = sphi 0, %s120
      %s135 = sphi 0, %s121
      %s139 = sphi 0, %s139
      %s141 = sphi 0, %s139
      %s142 = sphi 0, %s141
      %s156 = sphi 0, %s142
      %s162 = sphi 0, %s164
      %s165 = sphi 0, %s162
      %s166 = sphi 0, %s165
      %s182 = sphi 0, %s166
    $region4: #{tpu_custom_call.1} parent=1 // loop_header_branch
      %24 = sbr.rel (%p22) target = $region8
    $region5: #{tpu_custom_call.1} parent=1 // loop_body
      %s26 = ssub.s32 %s21, 1
      %s27 = ssub.s32 %s21, 2
      %s28 = sadd.s32 %s21, 1
      %s29 = ssub.s32 %s21, %s28
      %p30 = scmp.eq.s32.totalorder %s29, 0
      %s32 = sadd.s32 %s31, 1
      %s33 = scalar_select %p30, %s31, %s32
      %p36 = pneg %p30
      %p37 = scmp.eq.s32.totalorder %s21, 7
      %p38 = por %p36, %p37
      %p39 = scmp.ne.s32.totalorder %s31, %s34
      %p40 = scmp.eq.s32.totalorder %s21, 0
      %p41 = por %p39, %p40
      %p42 = scmp.ne.s32.totalorder %s31, %s34
      %p43 = scmp.eq.s32.totalorder %s26, 7
      %p44 = por %p42, %p43
      %p45 = scmp.ne.s32.totalorder %s34, %s35
      %p46 = scmp.eq.s32.totalorder %s26, 0
      %p47 = por %p45, %p46
      %p48 = scmp.ne.s32.totalorder %s34, %s35
      %p49 = scmp.eq.s32.totalorder %s27, 7
      %p50 = por %p48, %p49
      %p52 = scmp.ne.s32.totalorder %s35, %s51
      %p53 = scmp.eq.s32.totalorder %s27, 0
      %p54 = por %p52, %p53
      %s56 = sadd.s32 %s55, 1
      %p59 = scmp.eq.s32.totalorder %s21, 7
      %p60 = scmp.ne.s32.totalorder %s55, %s57
      %p61 = scmp.eq.s32.totalorder %s21, 0
      %p62 = por %p60, %p61
      %p63 = scmp.ne.s32.totalorder %s55, %s57
      %p64 = scmp.eq.s32.totalorder %s26, 7
      %p65 = por %p63, %p64
      %p66 = scmp.ne.s32.totalorder %s57, %s58
      %p67 = scmp.eq.s32.totalorder %s26, 0
      %p68 = por %p66, %p67
      %p69 = scmp.ne.s32.totalorder %s57, %s58
      %p70 = scmp.eq.s32.totalorder %s27, 7
      %p71 = por %p69, %p70
      %p73 = scmp.ne.s32.totalorder %s58, %s72
      %p74 = scmp.eq.s32.totalorder %s27, 0
      %p75 = por %p73, %p74
      %s77 = sadd.s32 %s76, 1
      %p80 = scmp.eq.s32.totalorder %s21, 7
      %p81 = scmp.ne.s32.totalorder %s76, %s78
      %p82 = scmp.eq.s32.totalorder %s21, 0
      %p83 = por %p81, %p82
      %p84 = scmp.ne.s32.totalorder %s76, %s78
      %p85 = scmp.eq.s32.totalorder %s26, 7
      %p86 = por %p84, %p85
      %p87 = scmp.ne.s32.totalorder %s78, %s79
      %p88 = scmp.eq.s32.totalorder %s26, 0
      %p89 = por %p87, %p88
      %p90 = scmp.ne.s32.totalorder %s78, %s79
      %p91 = scmp.eq.s32.totalorder %s27, 7
      %p92 = por %p90, %p91
      %p94 = scmp.ne.s32.totalorder %s79, %s93
      %p95 = scmp.eq.s32.totalorder %s27, 0
      %p96 = por %p94, %p95
      %s98 = sadd.s32 %s97, 1
      %p101 = scmp.eq.s32.totalorder %s21, 7
      %p102 = scmp.ne.s32.totalorder %s97, %s99
      %p103 = scmp.eq.s32.totalorder %s21, 0
      %p104 = por %p102, %p103
      %p105 = scmp.ne.s32.totalorder %s97, %s99
      %p106 = scmp.eq.s32.totalorder %s26, 7
      %p107 = por %p105, %p106
      %p108 = scmp.ne.s32.totalorder %s99, %s100
      %p109 = scmp.eq.s32.totalorder %s26, 0
      %p110 = por %p108, %p109
      %p111 = scmp.ne.s32.totalorder %s99, %s100
      %p112 = scmp.eq.s32.totalorder %s27, 7
      %p113 = por %p111, %p112
      %p115 = scmp.ne.s32.totalorder %s100, %s114
      %p116 = scmp.eq.s32.totalorder %s27, 0
      %p117 = por %p115, %p116
      %s119 = sadd.s32 %s118, 1
      %p122 = scmp.eq.s32.totalorder %s21, 7
      %p123 = scmp.ne.s32.totalorder %s118, %s120
      %p124 = scmp.eq.s32.totalorder %s21, 0
      %p125 = por %p123, %p124
      %p126 = scmp.ne.s32.totalorder %s118, %s120
      %p127 = scmp.eq.s32.totalorder %s26, 7
      %p128 = por %p126, %p127
      %p129 = scmp.ne.s32.totalorder %s120, %s121
      %p130 = scmp.eq.s32.totalorder %s26, 0
      %p131 = por %p129, %p130
      %p132 = scmp.ne.s32.totalorder %s120, %s121
      %p133 = scmp.eq.s32.totalorder %s27, 7
      %p134 = por %p132, %p133
      %p136 = scmp.ne.s32.totalorder %s121, %s135
      %p137 = scmp.eq.s32.totalorder %s27, 0
      %p138 = por %p136, %p137
      %s140 = sadd.s32 %s139, 1
      %p143 = scmp.eq.s32.totalorder %s21, 7
      %p144 = scmp.ne.s32.totalorder %s139, %s141
      %p145 = scmp.eq.s32.totalorder %s21, 0
      %p146 = por %p144, %p145
      %p147 = scmp.ne.s32.totalorder %s139, %s141
      %p148 = scmp.eq.s32.totalorder %s26, 7
      %p149 = por %p147, %p148
      %p150 = scmp.ne.s32.totalorder %s141, %s142
      %p151 = scmp.eq.s32.totalorder %s26, 0
      %p152 = por %p150, %p151
      %p153 = scmp.ne.s32.totalorder %s141, %s142
      %p154 = scmp.eq.s32.totalorder %s27, 7
      %p155 = por %p153, %p154
      %p157 = scmp.ne.s32.totalorder %s142, %s156
      %p158 = scmp.eq.s32.totalorder %s27, 0
      %p159 = por %p157, %p158
      %s160 = ssub.s32 %s21, %s28
      %p161 = scmp.eq.s32.totalorder %s160, 0
      %s163 = sadd.s32 %s162, 1
      %s164 = scalar_select %p161, %s162, %s163
      %p167 = pneg %p161
      %p168 = scmp.eq.s32.totalorder %s21, 7
      %p169 = por %p167, %p168
      %p170 = scmp.ne.s32.totalorder %s162, %s165
      %p171 = scmp.eq.s32.totalorder %s21, 0
      %p172 = por %p170, %p171
      %p173 = scmp.ne.s32.totalorder %s162, %s165
      %p174 = scmp.eq.s32.totalorder %s26, 7
      %p175 = por %p173, %p174
      %p176 = scmp.ne.s32.totalorder %s165, %s166
      %p177 = scmp.eq.s32.totalorder %s26, 0
      %p178 = por %p176, %p177
      %p179 = scmp.ne.s32.totalorder %s165, %s166
      %p180 = scmp.eq.s32.totalorder %s27, 7
      %p181 = por %p179, %p180
      %p183 = scmp.ne.s32.totalorder %s166, %s182
      %p184 = scmp.eq.s32.totalorder %s27, 0
      %p185 = por %p183, %p184
      %p186 = scmp.le.s32.totalorder 1, %s21
      %p187 = scmp.lt.s32.totalorder %s21, 9
      %p188 = pnand %p186, %p187
      %p189 = pneg %p188
      // Predicated region
      $region9: #{tpu_custom_call.1} parent=5 // pred_check
        _
      $region10: #{tpu_custom_call.1} parent=5 // pred_check_branch
        %191 = sbr.rel (%p188) target = $region12
      $region11: #{tpu_custom_call.1} parent=5 // pred_region
        %s192 = ssub.s32 %s21, 1
        // Predicated region
        $region13: #{tpu_custom_call.1} parent=11 // pred_check
          %p193 = pneg %p68
        $region14: #{tpu_custom_call.1} parent=11 // pred_check_branch
          %195 = sbr.rel (%p193) target = $region16
        $region15: #{tpu_custom_call.1} parent=11 // pred_region
          %s197 = ssub.s32 2048, 2048
          %198 = vsyncadd [#allocation6], %s197
          %s199 = sshll.u32 [#allocation5], 4
          %s200 = int_to_ptr.vmem [resolvable:$true] %s199
          %205 = dma.hbm_to_vmem [thread:$0]  %s1, 2048, %s200, [#allocation6], 128, 128, 8
        $region16: #{tpu_custom_call.1} parent=11 // pred_fallthru
          _
        // Predicated region
        $region17: #{tpu_custom_call.1} parent=11 // pred_check
          %p206 = pneg %p89
        $region18: #{tpu_custom_call.1} parent=11 // pred_check_branch
          %208 = sbr.rel (%p206) target = $region20
        $region19: #{tpu_custom_call.1} parent=11 // pred_region
          %s210 = ssub.s32 2048, 2048
          %211 = vsyncadd [#allocation6], %s210
          %s212 = sshll.u32 [#allocation7], 4
          %s213 = int_to_ptr.vmem [resolvable:$true] %s212
          %218 = dma.hbm_to_vmem [thread:$0]  %s2, 2048, %s213, [#allocation6], 128, 128, 8
        $region20: #{tpu_custom_call.1} parent=11 // pred_fallthru
          _
        // Predicated region
        $region21: #{tpu_custom_call.1} parent=11 // pred_check
          %p219 = pneg %p110
        $region22: #{tpu_custom_call.1} parent=11 // pred_check_branch
          %221 = sbr.rel (%p219) target = $region24
        $region23: #{tpu_custom_call.1} parent=11 // pred_region
          %s223 = ssub.s32 2048, 2048
          %224 = vsyncadd [#allocation9], %s223
          %s225 = sshll.u32 [#allocation8], 4
          %s226 = int_to_ptr.vmem [resolvable:$true] %s225
          %231 = dma.hbm_to_vmem [thread:$0]  %s3, 2048, %s226, [#allocation9], 128, 128, 8
        $region24: #{tpu_custom_call.1} parent=11 // pred_fallthru
          _
        // Predicated region
        $region25: #{tpu_custom_call.1} parent=11 // pred_check
          %p232 = pneg %p131
        $region26: #{tpu_custom_call.1} parent=11 // pred_check_branch
          %234 = sbr.rel (%p232) target = $region28
        $region27: #{tpu_custom_call.1} parent=11 // pred_region
          %s236 = ssub.s32 2048, 2048
          %237 = vsyncadd [#allocation9], %s236
          %s238 = sshll.u32 [#allocation10], 4
          %s239 = int_to_ptr.vmem [resolvable:$true] %s238
          %244 = dma.hbm_to_vmem [thread:$0]  %s4, 2048, %s239, [#allocation9], 128, 128, 8
        $region28: #{tpu_custom_call.1} parent=11 // pred_fallthru
          _
        // Predicated region
        $region29: #{tpu_custom_call.1} parent=11 // pred_check
          %p245 = pneg %p152
        $region30: #{tpu_custom_call.1} parent=11 // pred_check_branch
          %247 = sbr.rel (%p245) target = $region32
        $region31: #{tpu_custom_call.1} parent=11 // pred_region
          %s249 = ssub.s32 512, 512
          %250 = vsyncadd [#allocation12], %s249
          %s251 = sshll.u32 [#allocation11], 4
          %s252 = int_to_ptr.vmem [resolvable:$true] %s251
          %257 = dma.hbm_to_vmem [thread:$0]  %s5, 512, %s252, [#allocation12], 128, 128, 8
        $region32: #{tpu_custom_call.1} parent=11 // pred_fallthru
          _
      $region12: #{tpu_custom_call.1} parent=5 // pred_fallthru
        _
      %p258 = scmp.lt.s32.totalorder %s21, 8
      // Predicated region
      $region33: #{tpu_custom_call.1} parent=5 // pred_check
        %p259 = pneg %p258
      $region34: #{tpu_custom_call.1} parent=5 // pred_check_branch
        %261 = sbr.rel (%p259) target = $region36
      $region35: #{tpu_custom_call.1} parent=5 // pred_region
        // Predicated region
        $region37: #{tpu_custom_call.1} parent=35 // pred_check
          %p262 = pneg %p41
        $region38: #{tpu_custom_call.1} parent=35 // pred_check_branch
          %264 = sbr.rel (%p262) target = $region40
        $region39: #{tpu_custom_call.1} parent=35 // pred_region
          %s265 = sand.u32 %s31, 1
          %s266 = scalar_lea.sflag [#allocation3], %s265
          %s267 = sand.u32 %s31, 1
          %s268 = smul.addr %s267, 8
          %s269 = scalar_lea.vmem [#allocation2], %s268
          %s271 = ssub.s32 128, 128
          %272 = vsyncadd %s266, %s271
          %s273 = smul.addr %s21, 128
          %s274 = scalar_lea.hbm %s0, %s273
          %s276 = sshll.u32 %s269, 4
          %s277 = int_to_ptr.vmem [resolvable:$true] %s276
          %279 = dma.hbm_to_vmem [thread:$0]  %s274, 128, %s277, %s266
        $region40: #{tpu_custom_call.1} parent=35 // pred_fallthru
          _
      $region36: #{tpu_custom_call.1} parent=5 // pred_fallthru
        _
      %p280 = scmp.le.s32.totalorder 1, %s21
      %p281 = scmp.lt.s32.totalorder %s21, 9
      %p282 = pnand %p280, %p281
      %p283 = pneg %p282
      // Predicated region
      $region41: #{tpu_custom_call.1} parent=5 // pred_check
        _
      $region42: #{tpu_custom_call.1} parent=5 // pred_check_branch
        %285 = sbr.rel (%p282) target = $region44
      $region43: #{tpu_custom_call.1} parent=5 // pred_region
        %s286 = ssub.s32 %s21, 1
        %s287 = sand.u32 %s34, 1
        %s288 = scalar_lea.sflag [#allocation3], %s287
        %s289 = sand.u32 %s34, 1
        %s290 = smul.addr %s289, 8
        %s291 = scalar_lea.vmem [#allocation2], %s290
        // Predicated region
        $region45: #{tpu_custom_call.1} parent=43 // pred_check
          %p292 = pneg %p47
        $region46: #{tpu_custom_call.1} parent=43 // pred_check_branch
          %294 = sbr.rel (%p292) target = $region48
        $region47: #{tpu_custom_call.1} parent=43 // pred_region
          %295 = dma.done %s288, 128
        $region48: #{tpu_custom_call.1} parent=43 // pred_fallthru
          _
        // Predicated region
        $region49: #{tpu_custom_call.1} parent=43 // pred_check
          %p296 = pneg %p68
        $region50: #{tpu_custom_call.1} parent=43 // pred_check_branch
          %298 = sbr.rel (%p296) target = $region52
        $region51: #{tpu_custom_call.1} parent=43 // pred_region
          %299 = dma.done [#allocation6], 2048
        $region52: #{tpu_custom_call.1} parent=43 // pred_fallthru
          _
        // Predicated region
        $region53: #{tpu_custom_call.1} parent=43 // pred_check
          %p300 = pneg %p89
        $region54: #{tpu_custom_call.1} parent=43 // pred_check_branch
          %302 = sbr.rel (%p300) target = $region56
        $region55: #{tpu_custom_call.1} parent=43 // pred_region
          %303 = dma.done [#allocation6], 2048
        $region56: #{tpu_custom_call.1} parent=43 // pred_fallthru
          _
        // Predicated region
        $region57: #{tpu_custom_call.1} parent=43 // pred_check
          %p304 = pneg %p110
        $region58: #{tpu_custom_call.1} parent=43 // pred_check_branch
          %306 = sbr.rel (%p304) target = $region60
        $region59: #{tpu_custom_call.1} parent=43 // pred_region
          %307 = dma.done [#allocation9], 2048
        $region60: #{tpu_custom_call.1} parent=43 // pred_fallthru
          _
        // Predicated region
        $region61: #{tpu_custom_call.1} parent=43 // pred_check
          %p308 = pneg %p131
        $region62: #{tpu_custom_call.1} parent=43 // pred_check_branch
          %310 = sbr.rel (%p308) target = $region64
        $region63: #{tpu_custom_call.1} parent=43 // pred_region
          %311 = dma.done [#allocation9], 2048
        $region64: #{tpu_custom_call.1} parent=43 // pred_fallthru
          _
        // Predicated region
        $region65: #{tpu_custom_call.1} parent=43 // pred_check
          %p312 = pneg %p152
        $region66: #{tpu_custom_call.1} parent=43 // pred_check_branch
          %314 = sbr.rel (%p312) target = $region68
        $region67: #{tpu_custom_call.1} parent=43 // pred_region
          %315 = dma.done [#allocation12], 512
        $region68: #{tpu_custom_call.1} parent=43 // pred_fallthru
          _
        %s316 = sand.u32 %s34, 1
        %s317 = scalar_lea.sflag [#allocation3], %s316
        %s318 = sand.u32 %s34, 1
        %s319 = smul.addr %s318, 8
        %s320 = scalar_lea.vmem [#allocation2], %s319
        %p321 = pneg %p47
        %p322 = pneg %p44
        %p323 = pneg %p68
        %p324 = pneg %p65
        %p325 = pneg %p89
        %p326 = pneg %p86
        %p327 = pneg %p110
        %p328 = pneg %p107
        %p329 = pneg %p131
        %p330 = pneg %p128
        %p331 = pneg %p152
        %p332 = pneg %p149
        %p333 = pneg %p178
        %p334 = pneg %p175
        %s335 = sand.u32 %s165, 1
        %s336 = scalar_lea.sflag [#allocation4], %s335
        %s337 = sand.u32 %s165, 1
        %s338 = smul.addr %s337, 8
        %s339 = scalar_lea.vmem [#allocation13], %s338
        %v340 = vld [vmem:[%s291] sm:$0xff]
        %v341 = vld [vmem:[#allocation5] sm:$0xff]
        %v342 = vld [vmem:[#allocation5 + $0x8] sm:$0xff]
        %v343 = vld [vmem:[#allocation5 + $0x10] sm:$0xff]
        %v344 = vld [vmem:[#allocation5 + $0x18] sm:$0xff]
        %v345 = vld [vmem:[#allocation7] sm:$0xff]
        %v346 = vld [vmem:[#allocation7 + $0x8] sm:$0xff]
        %v347 = vld [vmem:[#allocation7 + $0x10] sm:$0xff]
        %v348 = vld [vmem:[#allocation7 + $0x18] sm:$0xff]
        %v349 = vld [vmem:[#allocation8] sm:$0xff]
        %v350 = vld [vmem:[#allocation8 + $0x8] sm:$0xff]
        %v351 = vld [vmem:[#allocation8 + $0x10] sm:$0xff]
        %v352 = vld [vmem:[#allocation8 + $0x18] sm:$0xff]
        %v353 = vld [vmem:[#allocation10] sm:$0xff]
        %v354 = vld [vmem:[#allocation10 + $0x8] sm:$0xff]
        %v355 = vld [vmem:[#allocation10 + $0x10] sm:$0xff]
        %v356 = vld [vmem:[#allocation10 + $0x18] sm:$0xff]
        %vm357 = vcmask 261120
        %v359 = vsel %vm357, %v340, 0
        %361 = vmatprep.subr.mxu0 0.0
        %362 = vmatpush1.msra.mxu0 %v341
        %363 = vmatprep.subr.mxu0 0.0
        %364 = vmatpush1.msra.mxu0 %v342
        %365 = vmatprep.subr.mxu0 0.0
        %366 = vmatpush1.msra.mxu0 %v343
        %367 = vmatprep.subr.mxu0 0.0
        %368 = vmatpush1.msra.mxu0 %v344
        %369 = vmatprep.subr.mxu0 0.0
        %370 = vmatpush1.msra.mxu0 0.0
        %371 = vmatprep.subr.mxu0 0.0
        %372 = vmatpush1.msra.mxu0 0.0
        %373 = vmatprep.subr.mxu0 0.0
        %374 = vmatpush1.msra.mxu0 0.0
        %375 = vmatprep.subr.mxu0 0.0
        %376 = vmatpush1.msra.mxu0 0.0
        %377 = vmatprep.subr.mxu0 0.0
        %378 = vmatpush1.msra.mxu0 0.0
        %379 = vmatprep.subr.mxu0 0.0
        %380 = vmatpush1.msra.mxu0 0.0
        %381 = vmatprep.subr.mxu0 0.0
        %382 = vmatpush1.msra.mxu0 0.0
        %383 = vmatprep.subr.mxu0 0.0
        %384 = vmatpush1.msra.mxu0 0.0
        %385 = vmatprep.subr.mxu0 0.0
        %386 = vmatpush1.msra.mxu0 0.0
        %387 = vmatprep.subr.mxu0 0.0
        %388 = vmatpush1.msra.mxu0 0.0
        %389 = vmatprep.subr.mxu0 0.0
        %390 = vmatpush1.msra.mxu0 0.0
        %391 = vmatprep.subr.mxu0 0.0
        %392 = vmatpush1.msra.mxu0 0.0
        %393 = vmatprep.subr.mxu0 0.0
        %394 = vmatpush1.msra.mxu0 0.0
        %395 = vmatprep.subr.mxu0 0.0
        %396 = vmatpush1.msra.mxu0 0.0
        %397 = vmatprep.subr.mxu0 0.0
        %398 = vmatpush1.msra.mxu0 0.0
        %399 = vmatprep.subr.mxu0 0.0
        %400 = vmatpush1.msra.mxu0 0.0
        %401 = vmatprep.subr.mxu0 0.0
        %402 = vmatpush1.msra.mxu0 0.0
        %403 = vmatprep.subr.mxu0 0.0
        %404 = vmatpush1.msra.mxu0 0.0
        %405 = vmatprep.subr.mxu0 0.0
        %406 = vmatpush1.msra.mxu0 0.0
        %407 = vmatprep.subr.mxu0 0.0
        %408 = vmatpush1.msra.mxu0 0.0
        %409 = vmatprep.subr.mxu0 0.0
        %410 = vmatpush1.msra.mxu0 0.0
        %411 = vmatprep.subr.mxu0 0.0
        %412 = vmatpush1.msra.mxu0 0.0
        %413 = vmatprep.subr.mxu0 0.0
        %414 = vmatpush1.msra.mxu0 0.0
        %415 = vmatprep.subr.mxu0 0.0
        %416 = vmatpush1.msra.mxu0 0.0
        %417 = vmatprep.subr.mxu0 0.0
        %418 = vmatpush1.msra.mxu0 0.0
        %419 = vmatprep.subr.mxu0 0.0
        %420 = vmatpush1.msra.mxu0 0.0
        %421 = vmatprep.subr.mxu0 0.0
        %422 = vmatpush1.msra.mxu0 0.0
        %423 = vmatprep.subr.mxu0 0.0
        %424 = vmatpush1.msra.mxu0 0.0
        %425 = vmatprep.mubr.f32.mxu0 0.0
        %426 = vmatmul.mubr.f32.gmra.mrb[0].mxu0 %v359
        %v427 = vpop.f32.mrb[0].mxu0
        %v428 = vadd.f32 0.0, %v427
        %v429 = vpop.f32.mrb[0].mxu0
        %430 = vdwg.mxu0
        %v431 = vmul.f32 %v428, 0.17677669
        %432 = vmatprep.subr.mxu0 0.0
        %433 = vmatpush1.msra.mxu0 %v345
        %434 = vmatprep.subr.mxu0 0.0
        %435 = vmatpush1.msra.mxu0 %v346
        %436 = vmatprep.subr.mxu0 0.0
        %437 = vmatpush1.msra.mxu0 %v347
        %438 = vmatprep.subr.mxu0 0.0
        %439 = vmatpush1.msra.mxu0 %v348
        %440 = vmatprep.subr.mxu0 0.0
        %441 = vmatpush1.msra.mxu0 0.0
        %442 = vmatprep.subr.mxu0 0.0
        %443 = vmatpush1.msra.mxu0 0.0
        %444 = vmatprep.subr.mxu0 0.0
        %445 = vmatpush1.msra.mxu0 0.0
        %446 = vmatprep.subr.mxu0 0.0
        %447 = vmatpush1.msra.mxu0 0.0
        %448 = vmatprep.subr.mxu0 0.0
        %449 = vmatpush1.msra.mxu0 0.0
        %450 = vmatprep.subr.mxu0 0.0
        %451 = vmatpush1.msra.mxu0 0.0
        %452 = vmatprep.subr.mxu0 0.0
        %453 = vmatpush1.msra.mxu0 0.0
        %454 = vmatprep.subr.mxu0 0.0
        %455 = vmatpush1.msra.mxu0 0.0
        %456 = vmatprep.subr.mxu0 0.0
        %457 = vmatpush1.msra.mxu0 0.0
        %458 = vmatprep.subr.mxu0 0.0
        %459 = vmatpush1.msra.mxu0 0.0
        %460 = vmatprep.subr.mxu0 0.0
        %461 = vmatpush1.msra.mxu0 0.0
        %462 = vmatprep.subr.mxu0 0.0
        %463 = vmatpush1.msra.mxu0 0.0
        %464 = vmatprep.subr.mxu0 0.0
        %465 = vmatpush1.msra.mxu0 0.0
        %466 = vmatprep.subr.mxu0 0.0
        %467 = vmatpush1.msra.mxu0 0.0
        %468 = vmatprep.subr.mxu0 0.0
        %469 = vmatpush1.msra.mxu0 0.0
        %470 = vmatprep.subr.mxu0 0.0
        %471 = vmatpush1.msra.mxu0 0.0
        %472 = vmatprep.subr.mxu0 0.0
        %473 = vmatpush1.msra.mxu0 0.0
        %474 = vmatprep.subr.mxu0 0.0
        %475 = vmatpush1.msra.mxu0 0.0
        %476 = vmatprep.subr.mxu0 0.0
        %477 = vmatpush1.msra.mxu0 0.0
        %478 = vmatprep.subr.mxu0 0.0
        %479 = vmatpush1.msra.mxu0 0.0
        %480 = vmatprep.subr.mxu0 0.0
        %481 = vmatpush1.msra.mxu0 0.0
        %482 = vmatprep.subr.mxu0 0.0
        %483 = vmatpush1.msra.mxu0 0.0
        %484 = vmatprep.subr.mxu0 0.0
        %485 = vmatpush1.msra.mxu0 0.0
        %486 = vmatprep.subr.mxu0 0.0
        %487 = vmatpush1.msra.mxu0 0.0
        %488 = vmatprep.subr.mxu0 0.0
        %489 = vmatpush1.msra.mxu0 0.0
        %490 = vmatprep.subr.mxu0 0.0
        %491 = vmatpush1.msra.mxu0 0.0
        %492 = vmatprep.subr.mxu0 0.0
        %493 = vmatpush1.msra.mxu0 0.0
        %494 = vmatprep.subr.mxu0 0.0
        %495 = vmatpush1.msra.mxu0 0.0
        %496 = vmatprep.mubr.f32.mxu0 0.0
        %497 = vmatmul.mubr.f32.gmra.mrb[0].mxu0 %v359
        %v498 = vpop.f32.mrb[0].mxu0
        %v499 = vadd.f32 0.0, %v498
        %v500 = vpop.f32.mrb[0].mxu0
        %501 = vdwg.mxu0
        %502 = vmatprep.subr.mxu0 0.0
        %503 = vmatpush1.msra.mxu0 %v349
        %504 = vmatprep.subr.mxu0 0.0
        %505 = vmatpush1.msra.mxu0 %v350
        %506 = vmatprep.subr.mxu0 0.0
        %507 = vmatpush1.msra.mxu0 %v351
        %508 = vmatprep.subr.mxu0 0.0
        %509 = vmatpush1.msra.mxu0 %v352
        %510 = vmatprep.subr.mxu0 0.0
        %511 = vmatpush1.msra.mxu0 0.0
        %512 = vmatprep.subr.mxu0 0.0
        %513 = vmatpush1.msra.mxu0 0.0
        %514 = vmatprep.subr.mxu0 0.0
        %515 = vmatpush1.msra.mxu0 0.0
        %516 = vmatprep.subr.mxu0 0.0
        %517 = vmatpush1.msra.mxu0 0.0
        %518 = vmatprep.subr.mxu0 0.0
        %519 = vmatpush1.msra.mxu0 0.0
        %520 = vmatprep.subr.mxu0 0.0
        %521 = vmatpush1.msra.mxu0 0.0
        %522 = vmatprep.subr.mxu0 0.0
        %523 = vmatpush1.msra.mxu0 0.0
        %524 = vmatprep.subr.mxu0 0.0
        %525 = vmatpush1.msra.mxu0 0.0
        %526 = vmatprep.subr.mxu0 0.0
        %527 = vmatpush1.msra.mxu0 0.0
        %528 = vmatprep.subr.mxu0 0.0
        %529 = vmatpush1.msra.mxu0 0.0
        %530 = vmatprep.subr.mxu0 0.0
        %531 = vmatpush1.msra.mxu0 0.0
        %532 = vmatprep.subr.mxu0 0.0
        %533 = vmatpush1.msra.mxu0 0.0
        %534 = vmatprep.subr.mxu0 0.0
        %535 = vmatpush1.msra.mxu0 0.0
        %536 = vmatprep.subr.mxu0 0.0
        %537 = vmatpush1.msra.mxu0 0.0
        %538 = vmatprep.subr.mxu0 0.0
        %539 = vmatpush1.msra.mxu0 0.0
        %540 = vmatprep.subr.mxu0 0.0
        %541 = vmatpush1.msra.mxu0 0.0
        %542 = vmatprep.subr.mxu0 0.0
        %543 = vmatpush1.msra.mxu0 0.0
        %544 = vmatprep.subr.mxu0 0.0
        %545 = vmatpush1.msra.mxu0 0.0
        %546 = vmatprep.subr.mxu0 0.0
        %547 = vmatpush1.msra.mxu0 0.0
        %548 = vmatprep.subr.mxu0 0.0
        %549 = vmatpush1.msra.mxu0 0.0
        %550 = vmatprep.subr.mxu0 0.0
        %551 = vmatpush1.msra.mxu0 0.0
        %552 = vmatprep.subr.mxu0 0.0
        %553 = vmatpush1.msra.mxu0 0.0
        %554 = vmatprep.subr.mxu0 0.0
        %555 = vmatpush1.msra.mxu0 0.0
        %556 = vmatprep.subr.mxu0 0.0
        %557 = vmatpush1.msra.mxu0 0.0
        %558 = vmatprep.subr.mxu0 0.0
        %559 = vmatpush1.msra.mxu0 0.0
        %560 = vmatprep.subr.mxu0 0.0
        %561 = vmatpush1.msra.mxu0 0.0
        %562 = vmatprep.subr.mxu0 0.0
        %563 = vmatpush1.msra.mxu0 0.0
        %564 = vmatprep.subr.mxu0 0.0
        %565 = vmatpush1.msra.mxu0 0.0
        %566 = vmatprep.mubr.f32.mxu0 0.0
        %567 = vmatmul.mubr.f32.gmra.mrb[0].mxu0 %v359
        %v568 = vpop.f32.mrb[0].mxu0
        %v569 = vadd.f32 0.0, %v568
        %v570 = vpop.f32.mrb[0].mxu0
        %571 = vdwg.mxu0
        %v572 = vld [vmem:[#allocation11] sm:$0xff]
        %v574 = vsel %vm357, %v431, 0
        %v577 = vsel %vm357, %v499, 0
        %579 = vmatprep.subr.mxu0 0.0
        %580 = vmatpush1.xpose.msra.mxu0 %v577
        %581 = vmatprep.subr.mxu0 0.0
        %582 = vmatpush1.xpose.msra.mxu0 0.0
        %583 = vmatprep.subr.mxu0 0.0
        %584 = vmatpush1.xpose.msra.mxu0 0.0
        %585 = vmatprep.subr.mxu0 0.0
        %586 = vmatpush1.xpose.msra.mxu0 0.0
        %587 = vmatprep.subr.mxu0 0.0
        %588 = vmatpush1.xpose.msra.mxu0 0.0
        %589 = vmatprep.subr.mxu0 0.0
        %590 = vmatpush1.xpose.msra.mxu0 0.0
        %591 = vmatprep.subr.mxu0 0.0
        %592 = vmatpush1.xpose.msra.mxu0 0.0
        %593 = vmatprep.subr.mxu0 0.0
        %594 = vmatpush1.xpose.msra.mxu0 0.0
        %595 = vmatprep.subr.mxu0 0.0
        %596 = vmatpush1.xpose.msra.mxu0 0.0
        %597 = vmatprep.subr.mxu0 0.0
        %598 = vmatpush1.xpose.msra.mxu0 0.0
        %599 = vmatprep.subr.mxu0 0.0
        %600 = vmatpush1.xpose.msra.mxu0 0.0
        %601 = vmatprep.subr.mxu0 0.0
        %602 = vmatpush1.xpose.msra.mxu0 0.0
        %603 = vmatprep.subr.mxu0 0.0
        %604 = vmatpush1.xpose.msra.mxu0 0.0
        %605 = vmatprep.subr.mxu0 0.0
        %606 = vmatpush1.xpose.msra.mxu0 0.0
        %607 = vmatprep.subr.mxu0 0.0
        %608 = vmatpush1.xpose.msra.mxu0 0.0
        %609 = vmatprep.subr.mxu0 0.0
        %610 = vmatpush1.xpose.msra.mxu0 0.0
        %611 = vmatprep.subr.mxu0 0.0
        %612 = vmatpush1.xpose.msra.mxu0 0.0
        %613 = vmatprep.subr.mxu0 0.0
        %614 = vmatpush1.xpose.msra.mxu0 0.0
        %615 = vmatprep.subr.mxu0 0.0
        %616 = vmatpush1.xpose.msra.mxu0 0.0
        %617 = vmatprep.subr.mxu0 0.0
        %618 = vmatpush1.xpose.msra.mxu0 0.0
        %619 = vmatprep.subr.mxu0 0.0
        %620 = vmatpush1.xpose.msra.mxu0 0.0
        %621 = vmatprep.subr.mxu0 0.0
        %622 = vmatpush1.xpose.msra.mxu0 0.0
        %623 = vmatprep.subr.mxu0 0.0
        %624 = vmatpush1.xpose.msra.mxu0 0.0
        %625 = vmatprep.subr.mxu0 0.0
        %626 = vmatpush1.xpose.msra.mxu0 0.0
        %627 = vmatprep.subr.mxu0 0.0
        %628 = vmatpush1.xpose.msra.mxu0 0.0
        %629 = vmatprep.subr.mxu0 0.0
        %630 = vmatpush1.xpose.msra.mxu0 0.0
        %631 = vmatprep.subr.mxu0 0.0
        %632 = vmatpush1.xpose.msra.mxu0 0.0
        %633 = vmatprep.subr.mxu0 0.0
        %634 = vmatpush1.xpose.msra.mxu0 0.0
        %635 = vmatprep.subr.mxu0 0.0
        %636 = vmatpush1.xpose.msra.mxu0 0.0
        %637 = vmatprep.subr.mxu0 0.0
        %638 = vmatpush1.xpose.msra.mxu0 0.0
        %639 = vmatprep.subr.mxu0 0.0
        %640 = vmatpush1.xpose.msra.mxu0 0.0
        %641 = vmatprep.subr.mxu0 0.0
        %642 = vmatpush1.xpose.msra.mxu0 0.0
        %643 = vmatprep.mubr.f32.mxu0 0.0
        %644 = vmatmul.mubr.f32.gmra.mrb[0].mxu0 %v574
        %v645 = vpop.f32.mrb[0].mxu0
        %v646 = vadd.f32 %v572, %v645
        %v647 = vpop.f32.mrb[0].mxu0
        %648 = vdwg.mxu0
        %vm649 = vcmask 64512
        %v650 = vsel %vm649, %v646, -inf
        %651 = vmax.xlane.f32.xlu0 %v650
        %v652 = vpop.xlane.xlu0 %651
        %v653 = vsub.f32 %v646, %v652
        %v654 = vmul.f32 %v653, 1.442695
        %v655 = vpow.pop %v654
        %v656 = vsel %vm649, %v655, 0.0
        %657 = vadd.xlane.f32.xlu0 %v656
        %v658 = vpop.xlane.xlu0 %657
        %v659 = vrcp.pop %v658
        %v660 = vmul.f32 %v655, %v659
        %v662 = vsel %vm649, %v660, 0
        %664 = vmatprep.subr.mxu0 0.0
        %665 = vmatpush1.msra.mxu0 %v569
        %666 = vmatprep.subr.mxu0 0.0
        %667 = vmatpush1.msra.mxu0 0.0
        %668 = vmatprep.subr.mxu0 0.0
        %669 = vmatpush1.msra.mxu0 0.0
        %670 = vmatprep.subr.mxu0 0.0
        %671 = vmatpush1.msra.mxu0 0.0
        %672 = vmatprep.subr.mxu0 0.0
        %673 = vmatpush1.msra.mxu0 0.0
        %674 = vmatprep.subr.mxu0 0.0
        %675 = vmatpush1.msra.mxu0 0.0
        %676 = vmatprep.subr.mxu0 0.0
        %677 = vmatpush1.msra.mxu0 0.0
        %678 = vmatprep.subr.mxu0 0.0
        %679 = vmatpush1.msra.mxu0 0.0
        %680 = vmatprep.subr.mxu0 0.0
        %681 = vmatpush1.msra.mxu0 0.0
        %682 = vmatprep.subr.mxu0 0.0
        %683 = vmatpush1.msra.mxu0 0.0
        %684 = vmatprep.subr.mxu0 0.0
        %685 = vmatpush1.msra.mxu0 0.0
        %686 = vmatprep.subr.mxu0 0.0
        %687 = vmatpush1.msra.mxu0 0.0
        %688 = vmatprep.subr.mxu0 0.0
        %689 = vmatpush1.msra.mxu0 0.0
        %690 = vmatprep.subr.mxu0 0.0
        %691 = vmatpush1.msra.mxu0 0.0
        %692 = vmatprep.subr.mxu0 0.0
        %693 = vmatpush1.msra.mxu0 0.0
        %694 = vmatprep.subr.mxu0 0.0
        %695 = vmatpush1.msra.mxu0 0.0
        %696 = vmatprep.subr.mxu0 0.0
        %697 = vmatpush1.msra.mxu0 0.0
        %698 = vmatprep.subr.mxu0 0.0
        %699 = vmatpush1.msra.mxu0 0.0
        %700 = vmatprep.subr.mxu0 0.0
        %701 = vmatpush1.msra.mxu0 0.0
        %702 = vmatprep.subr.mxu0 0.0
        %703 = vmatpush1.msra.mxu0 0.0
        %704 = vmatprep.subr.mxu0 0.0
        %705 = vmatpush1.msra.mxu0 0.0
        %706 = vmatprep.subr.mxu0 0.0
        %707 = vmatpush1.msra.mxu0 0.0
        %708 = vmatprep.subr.mxu0 0.0
        %709 = vmatpush1.msra.mxu0 0.0
        %710 = vmatprep.subr.mxu0 0.0
        %711 = vmatpush1.msra.mxu0 0.0
        %712 = vmatprep.subr.mxu0 0.0
        %713 = vmatpush1.msra.mxu0 0.0
        %714 = vmatprep.subr.mxu0 0.0
        %715 = vmatpush1.msra.mxu0 0.0
        %716 = vmatprep.subr.mxu0 0.0
        %717 = vmatpush1.msra.mxu0 0.0
        %718 = vmatprep.subr.mxu0 0.0
        %719 = vmatpush1.msra.mxu0 0.0
        %720 = vmatprep.subr.mxu0 0.0
        %721 = vmatpush1.msra.mxu0 0.0
        %722 = vmatprep.subr.mxu0 0.0
        %723 = vmatpush1.msra.mxu0 0.0
        %724 = vmatprep.subr.mxu0 0.0
        %725 = vmatpush1.msra.mxu0 0.0
        %726 = vmatprep.subr.mxu0 0.0
        %727 = vmatpush1.msra.mxu0 0.0
        %728 = vmatprep.mubr.f32.mxu0 0.0
        %729 = vmatmul.mubr.f32.gmra.mrb[0].mxu0 %v662
        %v730 = vpop.f32.mrb[0].mxu0
        %v731 = vadd.f32 0.0, %v730
        %v732 = vpop.f32.mrb[0].mxu0
        %733 = vdwg.mxu0
        %s734 = scalar_lea.vmem [#allocation5], 32
        %v735 = vld [vmem:[%s734] sm:$0xff]
        %v736 = vld [vmem:[%s734 + $0x8] sm:$0xff]
        %v737 = vld [vmem:[%s734 + $0x10] sm:$0xff]
        %v738 = vld [vmem:[%s734 + $0x18] sm:$0xff]
        %s739 = scalar_lea.vmem [#allocation7], 32
        %v740 = vld [vmem:[%s739] sm:$0xff]
        %v741 = vld [vmem:[%s739 + $0x8] sm:$0xff]
        %v742 = vld [vmem:[%s739 + $0x10] sm:$0xff]
        %v743 = vld [vmem:[%s739 + $0x18] sm:$0xff]
        %s744 = scalar_lea.vmem [#allocation8], 32
        %v745 = vld [vmem:[%s744] sm:$0xff]
        %v746 = vld [vmem:[%s744 + $0x8] sm:$0xff]
        %v747 = vld [vmem:[%s744 + $0x10] sm:$0xff]
        %v748 = vld [vmem:[%s744 + $0x18] sm:$0xff]
        %s749 = scalar_lea.vmem [#allocation10], 32
        %v750 = vld [vmem:[%s749] sm:$0xff]
        %v751 = vld [vmem:[%s749 + $0x8] sm:$0xff]
        %v752 = vld [vmem:[%s749 + $0x10] sm:$0xff]
        %v753 = vld [vmem:[%s749 + $0x18] sm:$0xff]
        %754 = vmatprep.subr.mxu0 0.0
        %755 = vmatpush1.msra.mxu0 %v735
        %756 = vmatprep.subr.mxu0 0.0
        %757 = vmatpush1.msra.mxu0 %v736
        %758 = vmatprep.subr.mxu0 0.0
        %759 = vmatpush1.msra.mxu0 %v737
        %760 = vmatprep.subr.mxu0 0.0
        %761 = vmatpush1.msra.mxu0 %v738
        %762 = vmatprep.subr.mxu0 0.0
        %763 = vmatpush1.msra.mxu0 0.0
        %764 = vmatprep.subr.mxu0 0.0
        %765 = vmatpush1.msra.mxu0 0.0
        %766 = vmatprep.subr.mxu0 0.0
        %767 = vmatpush1.msra.mxu0 0.0
        %768 = vmatprep.subr.mxu0 0.0
        %769 = vmatpush1.msra.mxu0 0.0
        %770 = vmatprep.subr.mxu0 0.0
        %771 = vmatpush1.msra.mxu0 0.0
        %772 = vmatprep.subr.mxu0 0.0
        %773 = vmatpush1.msra.mxu0 0.0
        %774 = vmatprep.subr.mxu0 0.0
        %775 = vmatpush1.msra.mxu0 0.0
        %776 = vmatprep.subr.mxu0 0.0
        %777 = vmatpush1.msra.mxu0 0.0
        %778 = vmatprep.subr.mxu0 0.0
        %779 = vmatpush1.msra.mxu0 0.0
        %780 = vmatprep.subr.mxu0 0.0
        %781 = vmatpush1.msra.mxu0 0.0
        %782 = vmatprep.subr.mxu0 0.0
        %783 = vmatpush1.msra.mxu0 0.0
        %784 = vmatprep.subr.mxu0 0.0
        %785 = vmatpush1.msra.mxu0 0.0
        %786 = vmatprep.subr.mxu0 0.0
        %787 = vmatpush1.msra.mxu0 0.0
        %788 = vmatprep.subr.mxu0 0.0
        %789 = vmatpush1.msra.mxu0 0.0
        %790 = vmatprep.subr.mxu0 0.0
        %791 = vmatpush1.msra.mxu0 0.0
        %792 = vmatprep.subr.mxu0 0.0
        %793 = vmatpush1.msra.mxu0 0.0
        %794 = vmatprep.subr.mxu0 0.0
        %795 = vmatpush1.msra.mxu0 0.0
        %796 = vmatprep.subr.mxu0 0.0
        %797 = vmatpush1.msra.mxu0 0.0
        %798 = vmatprep.subr.mxu0 0.0
        %799 = vmatpush1.msra.mxu0 0.0
        %800 = vmatprep.subr.mxu0 0.0
        %801 = vmatpush1.msra.mxu0 0.0
        %802 = vmatprep.subr.mxu0 0.0
        %803 = vmatpush1.msra.mxu0 0.0
        %804 = vmatprep.subr.mxu0 0.0
        %805 = vmatpush1.msra.mxu0 0.0
        %806 = vmatprep.subr.mxu0 0.0
        %807 = vmatpush1.msra.mxu0 0.0
        %808 = vmatprep.subr.mxu0 0.0
        %809 = vmatpush1.msra.mxu0 0.0
        %810 = vmatprep.subr.mxu0 0.0
        %811 = vmatpush1.msra.mxu0 0.0
        %812 = vmatprep.subr.mxu0 0.0
        %813 = vmatpush1.msra.mxu0 0.0
        %814 = vmatprep.subr.mxu0 0.0
        %815 = vmatpush1.msra.mxu0 0.0
        %816 = vmatprep.subr.mxu0 0.0
        %817 = vmatpush1.msra.mxu0 0.0
        %818 = vmatprep.mubr.f32.mxu0 0.0
        %819 = vmatmul.mubr.f32.gmra.mrb[0].mxu0 %v359
        %v820 = vpop.f32.mrb[0].mxu0
        %v821 = vadd.f32 0.0, %v820
        %v822 = vpop.f32.mrb[0].mxu0
        %823 = vdwg.mxu0
        %v824 = vmul.f32 %v821, 0.17677669
        %825 = vmatprep.subr.mxu0 0.0
        %826 = vmatpush1.msra.mxu0 %v740
        %827 = vmatprep.subr.mxu0 0.0
        %828 = vmatpush1.msra.mxu0 %v741
        %829 = vmatprep.subr.mxu0 0.0
        %830 = vmatpush1.msra.mxu0 %v742
        %831 = vmatprep.subr.mxu0 0.0
        %832 = vmatpush1.msra.mxu0 %v743
        %833 = vmatprep.subr.mxu0 0.0
        %834 = vmatpush1.msra.mxu0 0.0
        %835 = vmatprep.subr.mxu0 0.0
        %836 = vmatpush1.msra.mxu0 0.0
        %837 = vmatprep.subr.mxu0 0.0
        %838 = vmatpush1.msra.mxu0 0.0
        %839 = vmatprep.subr.mxu0 0.0
        %840 = vmatpush1.msra.mxu0 0.0
        %841 = vmatprep.subr.mxu0 0.0
        %842 = vmatpush1.msra.mxu0 0.0
        %843 = vmatprep.subr.mxu0 0.0
        %844 = vmatpush1.msra.mxu0 0.0
        %845 = vmatprep.subr.mxu0 0.0
        %846 = vmatpush1.msra.mxu0 0.0
        %847 = vmatprep.subr.mxu0 0.0
        %848 = vmatpush1.msra.mxu0 0.0
        %849 = vmatprep.subr.mxu0 0.0
        %850 = vmatpush1.msra.mxu0 0.0
        %851 = vmatprep.subr.mxu0 0.0
        %852 = vmatpush1.msra.mxu0 0.0
        %853 = vmatprep.subr.mxu0 0.0
        %854 = vmatpush1.msra.mxu0 0.0
        %855 = vmatprep.subr.mxu0 0.0
        %856 = vmatpush1.msra.mxu0 0.0
        %857 = vmatprep.subr.mxu0 0.0
        %858 = vmatpush1.msra.mxu0 0.0
        %859 = vmatprep.subr.mxu0 0.0
        %860 = vmatpush1.msra.mxu0 0.0
        %861 = vmatprep.subr.mxu0 0.0
        %862 = vmatpush1.msra.mxu0 0.0
        %863 = vmatprep.subr.mxu0 0.0
        %864 = vmatpush1.msra.mxu0 0.0
        %865 = vmatprep.subr.mxu0 0.0
        %866 = vmatpush1.msra.mxu0 0.0
        %867 = vmatprep.subr.mxu0 0.0
        %868 = vmatpush1.msra.mxu0 0.0
        %869 = vmatprep.subr.mxu0 0.0
        %870 = vmatpush1.msra.mxu0 0.0
        %871 = vmatprep.subr.mxu0 0.0
        %872 = vmatpush1.msra.mxu0 0.0
        %873 = vmatprep.subr.mxu0 0.0
        %874 = vmatpush1.msra.mxu0 0.0
        %875 = vmatprep.subr.mxu0 0.0
        %876 = vmatpush1.msra.mxu0 0.0
        %877 = vmatprep.subr.mxu0 0.0
        %878 = vmatpush1.msra.mxu0 0.0
        %879 = vmatprep.subr.mxu0 0.0
        %880 = vmatpush1.msra.mxu0 0.0
        %881 = vmatprep.subr.mxu0 0.0
        %882 = vmatpush1.msra.mxu0 0.0
        %883 = vmatprep.subr.mxu0 0.0
        %884 = vmatpush1.msra.mxu0 0.0
        %885 = vmatprep.subr.mxu0 0.0
        %886 = vmatpush1.msra.mxu0 0.0
        %887 = vmatprep.subr.mxu0 0.0
        %888 = vmatpush1.msra.mxu0 0.0
        %889 = vmatprep.mubr.f32.mxu0 0.0
        %890 = vmatmul.mubr.f32.gmra.mrb[0].mxu0 %v359
        %v891 = vpop.f32.mrb[0].mxu0
        %v892 = vadd.f32 0.0, %v891
        %v893 = vpop.f32.mrb[0].mxu0
        %894 = vdwg.mxu0
        %895 = vmatprep.subr.mxu0 0.0
        %896 = vmatpush1.msra.mxu0 %v745
        %897 = vmatprep.subr.mxu0 0.0
        %898 = vmatpush1.msra.mxu0 %v746
        %899 = vmatprep.subr.mxu0 0.0
        %900 = vmatpush1.msra.mxu0 %v747
        %901 = vmatprep.subr.mxu0 0.0
        %902 = vmatpush1.msra.mxu0 %v748
        %903 = vmatprep.subr.mxu0 0.0
        %904 = vmatpush1.msra.mxu0 0.0
        %905 = vmatprep.subr.mxu0 0.0
        %906 = vmatpush1.msra.mxu0 0.0
        %907 = vmatprep.subr.mxu0 0.0
        %908 = vmatpush1.msra.mxu0 0.0
        %909 = vmatprep.subr.mxu0 0.0
        %910 = vmatpush1.msra.mxu0 0.0
        %911 = vmatprep.subr.mxu0 0.0
        %912 = vmatpush1.msra.mxu0 0.0
        %913 = vmatprep.subr.mxu0 0.0
        %914 = vmatpush1.msra.mxu0 0.0
        %915 = vmatprep.subr.mxu0 0.0
        %916 = vmatpush1.msra.mxu0 0.0
        %917 = vmatprep.subr.mxu0 0.0
        %918 = vmatpush1.msra.mxu0 0.0
        %919 = vmatprep.subr.mxu0 0.0
        %920 = vmatpush1.msra.mxu0 0.0
        %921 = vmatprep.subr.mxu0 0.0
        %922 = vmatpush1.msra.mxu0 0.0
        %923 = vmatprep.subr.mxu0 0.0
        %924 = vmatpush1.msra.mxu0 0.0
        %925 = vmatprep.subr.mxu0 0.0
        %926 = vmatpush1.msra.mxu0 0.0
        %927 = vmatprep.subr.mxu0 0.0
        %928 = vmatpush1.msra.mxu0 0.0
        %929 = vmatprep.subr.mxu0 0.0
        %930 = vmatpush1.msra.mxu0 0.0
        %931 = vmatprep.subr.mxu0 0.0
        %932 = vmatpush1.msra.mxu0 0.0
        %933 = vmatprep.subr.mxu0 0.0
        %934 = vmatpush1.msra.mxu0 0.0
        %935 = vmatprep.subr.mxu0 0.0
        %936 = vmatpush1.msra.mxu0 0.0
        %937 = vmatprep.subr.mxu0 0.0
        %938 = vmatpush1.msra.mxu0 0.0
        %939 = vmatprep.subr.mxu0 0.0
        %940 = vmatpush1.msra.mxu0 0.0
        %941 = vmatprep.subr.mxu0 0.0
        %942 = vmatpush1.msra.mxu0 0.0
        %943 = vmatprep.subr.mxu0 0.0
        %944 = vmatpush1.msra.mxu0 0.0
        %945 = vmatprep.subr.mxu0 0.0
        %946 = vmatpush1.msra.mxu0 0.0
        %947 = vmatprep.subr.mxu0 0.0
        %948 = vmatpush1.msra.mxu0 0.0
        %949 = vmatprep.subr.mxu0 0.0
        %950 = vmatpush1.msra.mxu0 0.0
        %951 = vmatprep.subr.mxu0 0.0
        %952 = vmatpush1.msra.mxu0 0.0
        %953 = vmatprep.subr.mxu0 0.0
        %954 = vmatpush1.msra.mxu0 0.0
        %955 = vmatprep.subr.mxu0 0.0
        %956 = vmatpush1.msra.mxu0 0.0
        %957 = vmatprep.subr.mxu0 0.0
        %958 = vmatpush1.msra.mxu0 0.0
        %959 = vmatprep.mubr.f32.mxu0 0.0
        %960 = vmatmul.mubr.f32.gmra.mrb[0].mxu0 %v359
        %v961 = vpop.f32.mrb[0].mxu0
        %v962 = vadd.f32 0.0, %v961
        %v963 = vpop.f32.mrb[0].mxu0
        %964 = vdwg.mxu0
        %s965 = scalar_lea.vmem [#allocation11], 8
        %v966 = vld [vmem:[%s965] sm:$0xff]
        %v968 = vsel %vm357, %v824, 0
        %v971 = vsel %vm357, %v892, 0
        %973 = vmatprep.subr.mxu0 0.0
        %974 = vmatpush1.xpose.msra.mxu0 %v971
        %975 = vmatprep.subr.mxu0 0.0
        %976 = vmatpush1.xpose.msra.mxu0 0.0
        %977 = vmatprep.subr.mxu0 0.0
        %978 = vmatpush1.xpose.msra.mxu0 0.0
        %979 = vmatprep.subr.mxu0 0.0
        %980 = vmatpush1.xpose.msra.mxu0 0.0
        %981 = vmatprep.subr.mxu0 0.0
        %982 = vmatpush1.xpose.msra.mxu0 0.0
        %983 = vmatprep.subr.mxu0 0.0
        %984 = vmatpush1.xpose.msra.mxu0 0.0
        %985 = vmatprep.subr.mxu0 0.0
        %986 = vmatpush1.xpose.msra.mxu0 0.0
        %987 = vmatprep.subr.mxu0 0.0
        %988 = vmatpush1.xpose.msra.mxu0 0.0
        %989 = vmatprep.subr.mxu0 0.0
        %990 = vmatpush1.xpose.msra.mxu0 0.0
        %991 = vmatprep.subr.mxu0 0.0
        %992 = vmatpush1.xpose.msra.mxu0 0.0
        %993 = vmatprep.subr.mxu0 0.0
        %994 = vmatpush1.xpose.msra.mxu0 0.0
        %995 = vmatprep.subr.mxu0 0.0
        %996 = vmatpush1.xpose.msra.mxu0 0.0
        %997 = vmatprep.subr.mxu0 0.0
        %998 = vmatpush1.xpose.msra.mxu0 0.0
        %999 = vmatprep.subr.mxu0 0.0
        %1000 = vmatpush1.xpose.msra.mxu0 0.0
        %1001 = vmatprep.subr.mxu0 0.0
        %1002 = vmatpush1.xpose.msra.mxu0 0.0
        %1003 = vmatprep.subr.mxu0 0.0
        %1004 = vmatpush1.xpose.msra.mxu0 0.0
        %1005 = vmatprep.subr.mxu0 0.0
        %1006 = vmatpush1.xpose.msra.mxu0 0.0
        %1007 = vmatprep.subr.mxu0 0.0
        %1008 = vmatpush1.xpose.msra.mxu0 0.0
        %1009 = vmatprep.subr.mxu0 0.0
        %1010 = vmatpush1.xpose.msra.mxu0 0.0
        %1011 = vmatprep.subr.mxu0 0.0
        %1012 = vmatpush1.xpose.msra.mxu0 0.0
        %1013 = vmatprep.subr.mxu0 0.0
        %1014 = vmatpush1.xpose.msra.mxu0 0.0
        %1015 = vmatprep.subr.mxu0 0.0
        %1016 = vmatpush1.xpose.msra.mxu0 0.0
        %1017 = vmatprep.subr.mxu0 0.0
        %1018 = vmatpush1.xpose.msra.mxu0 0.0
        %1019 = vmatprep.subr.mxu0 0.0
        %1020 = vmatpush1.xpose.msra.mxu0 0.0
        %1021 = vmatprep.subr.mxu0 0.0
        %1022 = vmatpush1.xpose.msra.mxu0 0.0
        %1023 = vmatprep.subr.mxu0 0.0
        %1024 = vmatpush1.xpose.msra.mxu0 0.0
        %1025 = vmatprep.subr.mxu0 0.0
        %1026 = vmatpush1.xpose.msra.mxu0 0.0
        %1027 = vmatprep.subr.mxu0 0.0
        %1028 = vmatpush1.xpose.msra.mxu0 0.0
        %1029 = vmatprep.subr.mxu0 0.0
        %1030 = vmatpush1.xpose.msra.mxu0 0.0
        %1031 = vmatprep.subr.mxu0 0.0
        %1032 = vmatpush1.xpose.msra.mxu0 0.0
        %1033 = vmatprep.subr.mxu0 0.0
        %1034 = vmatpush1.xpose.msra.mxu0 0.0
        %1035 = vmatprep.subr.mxu0 0.0
        %1036 = vmatpush1.xpose.msra.mxu0 0.0
        %1037 = vmatprep.mubr.f32.mxu0 0.0
        %1038 = vmatmul.mubr.f32.gmra.mrb[0].mxu0 %v968
        %v1039 = vpop.f32.mrb[0].mxu0
        %v1040 = vadd.f32 %v966, %v1039
        %v1041 = vpop.f32.mrb[0].mxu0
        %1042 = vdwg.mxu0
        %v1043 = vsel %vm649, %v1040, -inf
        %1044 = vmax.xlane.f32.xlu0 %v1043
        %v1045 = vpop.xlane.xlu0 %1044
        %v1046 = vsub.f32 %v1040, %v1045
        %v1047 = vmul.f32 %v1046, 1.442695
        %v1048 = vpow.pop %v1047
        %v1049 = vsel %vm649, %v1048, 0.0
        %1050 = vadd.xlane.f32.xlu0 %v1049
        %v1051 = vpop.xlane.xlu0 %1050
        %v1052 = vrcp.pop %v1051
        %v1053 = vmul.f32 %v1048, %v1052
        %v1055 = vsel %vm649, %v1053, 0
        %1057 = vmatprep.subr.mxu0 0.0
        %1058 = vmatpush1.msra.mxu0 %v962
        %1059 = vmatprep.subr.mxu0 0.0
        %1060 = vmatpush1.msra.mxu0 0.0
        %1061 = vmatprep.subr.mxu0 0.0
        %1062 = vmatpush1.msra.mxu0 0.0
        %1063 = vmatprep.subr.mxu0 0.0
        %1064 = vmatpush1.msra.mxu0 0.0
        %1065 = vmatprep.subr.mxu0 0.0
        %1066 = vmatpush1.msra.mxu0 0.0
        %1067 = vmatprep.subr.mxu0 0.0
        %1068 = vmatpush1.msra.mxu0 0.0
        %1069 = vmatprep.subr.mxu0 0.0
        %1070 = vmatpush1.msra.mxu0 0.0
        %1071 = vmatprep.subr.mxu0 0.0
        %1072 = vmatpush1.msra.mxu0 0.0
        %1073 = vmatprep.subr.mxu0 0.0
        %1074 = vmatpush1.msra.mxu0 0.0
        %1075 = vmatprep.subr.mxu0 0.0
        %1076 = vmatpush1.msra.mxu0 0.0
        %1077 = vmatprep.subr.mxu0 0.0
        %1078 = vmatpush1.msra.mxu0 0.0
        %1079 = vmatprep.subr.mxu0 0.0
        %1080 = vmatpush1.msra.mxu0 0.0
        %1081 = vmatprep.subr.mxu0 0.0
        %1082 = vmatpush1.msra.mxu0 0.0
        %1083 = vmatprep.subr.mxu0 0.0
        %1084 = vmatpush1.msra.mxu0 0.0
        %1085 = vmatprep.subr.mxu0 0.0
        %1086 = vmatpush1.msra.mxu0 0.0
        %1087 = vmatprep.subr.mxu0 0.0
        %1088 = vmatpush1.msra.mxu0 0.0
        %1089 = vmatprep.subr.mxu0 0.0
        %1090 = vmatpush1.msra.mxu0 0.0
        %1091 = vmatprep.subr.mxu0 0.0
        %1092 = vmatpush1.msra.mxu0 0.0
        %1093 = vmatprep.subr.mxu0 0.0
        %1094 = vmatpush1.msra.mxu0 0.0
        %1095 = vmatprep.subr.mxu0 0.0
        %1096 = vmatpush1.msra.mxu0 0.0
        %1097 = vmatprep.subr.mxu0 0.0
        %1098 = vmatpush1.msra.mxu0 0.0
        %1099 = vmatprep.subr.mxu0 0.0
        %1100 = vmatpush1.msra.mxu0 0.0
        %1101 = vmatprep.subr.mxu0 0.0
        %1102 = vmatpush1.msra.mxu0 0.0
        %1103 = vmatprep.subr.mxu0 0.0
        %1104 = vmatpush1.msra.mxu0 0.0
        %1105 = vmatprep.subr.mxu0 0.0
        %1106 = vmatpush1.msra.mxu0 0.0
        %1107 = vmatprep.subr.mxu0 0.0
        %1108 = vmatpush1.msra.mxu0 0.0
        %1109 = vmatprep.subr.mxu0 0.0
        %1110 = vmatpush1.msra.mxu0 0.0
        %1111 = vmatprep.subr.mxu0 0.0
        %1112 = vmatpush1.msra.mxu0 0.0
        %1113 = vmatprep.subr.mxu0 0.0
        %1114 = vmatpush1.msra.mxu0 0.0
        %1115 = vmatprep.subr.mxu0 0.0
        %1116 = vmatpush1.msra.mxu0 0.0
        %1117 = vmatprep.subr.mxu0 0.0
        %1118 = vmatpush1.msra.mxu0 0.0
        %1119 = vmatprep.subr.mxu0 0.0
        %1120 = vmatpush1.msra.mxu0 0.0
        %1121 = vmatprep.mubr.f32.mxu0 0.0
        %1122 = vmatmul.mubr.f32.gmra.mrb[0].mxu0 %v1055
        %v1123 = vpop.f32.mrb[0].mxu0
        %v1124 = vadd.f32 0.0, %v1123
        %v1125 = vpop.f32.mrb[0].mxu0
        %1126 = vdwg.mxu0
        %v1128 = vsel %vm357, %v1124, 0
        %1130 = vmatprep.subr.mxu0 0.0
        %1131 = vmatpush1.msra.mxu0 %v750
        %1132 = vmatprep.subr.mxu0 0.0
        %1133 = vmatpush1.msra.mxu0 %v751
        %1134 = vmatprep.subr.mxu0 0.0
        %1135 = vmatpush1.msra.mxu0 %v752
        %1136 = vmatprep.subr.mxu0 0.0
        %1137 = vmatpush1.msra.mxu0 %v753
        %1138 = vmatprep.subr.mxu0 0.0
        %1139 = vmatpush1.msra.mxu0 0.0
        %1140 = vmatprep.subr.mxu0 0.0
        %1141 = vmatpush1.msra.mxu0 0.0
        %1142 = vmatprep.subr.mxu0 0.0
        %1143 = vmatpush1.msra.mxu0 0.0
        %1144 = vmatprep.subr.mxu0 0.0
        %1145 = vmatpush1.msra.mxu0 0.0
        %1146 = vmatprep.subr.mxu0 0.0
        %1147 = vmatpush1.msra.mxu0 0.0
        %1148 = vmatprep.subr.mxu0 0.0
        %1149 = vmatpush1.msra.mxu0 0.0
        %1150 = vmatprep.subr.mxu0 0.0
        %1151 = vmatpush1.msra.mxu0 0.0
        %1152 = vmatprep.subr.mxu0 0.0
        %1153 = vmatpush1.msra.mxu0 0.0
        %1154 = vmatprep.subr.mxu0 0.0
        %1155 = vmatpush1.msra.mxu0 0.0
        %1156 = vmatprep.subr.mxu0 0.0
        %1157 = vmatpush1.msra.mxu0 0.0
        %1158 = vmatprep.subr.mxu0 0.0
        %1159 = vmatpush1.msra.mxu0 0.0
        %1160 = vmatprep.subr.mxu0 0.0
        %1161 = vmatpush1.msra.mxu0 0.0
        %1162 = vmatprep.subr.mxu0 0.0
        %1163 = vmatpush1.msra.mxu0 0.0
        %1164 = vmatprep.subr.mxu0 0.0
        %1165 = vmatpush1.msra.mxu0 0.0
        %1166 = vmatprep.subr.mxu0 0.0
        %1167 = vmatpush1.msra.mxu0 0.0
        %1168 = vmatprep.subr.mxu0 0.0
        %1169 = vmatpush1.msra.mxu0 0.0
        %1170 = vmatprep.subr.mxu0 0.0
        %1171 = vmatpush1.msra.mxu0 0.0
        %1172 = vmatprep.subr.mxu0 0.0
        %1173 = vmatpush1.msra.mxu0 0.0
        %1174 = vmatprep.subr.mxu0 0.0
        %1175 = vmatpush1.msra.mxu0 0.0
        %1176 = vmatprep.subr.mxu0 0.0
        %1177 = vmatpush1.msra.mxu0 0.0
        %1178 = vmatprep.subr.mxu0 0.0
        %1179 = vmatpush1.msra.mxu0 0.0
        %1180 = vmatprep.subr.mxu0 0.0
        %1181 = vmatpush1.msra.mxu0 0.0
        %1182 = vmatprep.subr.mxu0 0.0
        %1183 = vmatpush1.msra.mxu0 0.0
        %1184 = vmatprep.subr.mxu0 0.0
        %1185 = vmatpush1.msra.mxu0 0.0
        %1186 = vmatprep.subr.mxu0 0.0
        %1187 = vmatpush1.msra.mxu0 0.0
        %1188 = vmatprep.subr.mxu0 0.0
        %1189 = vmatpush1.msra.mxu0 0.0
        %1190 = vmatprep.subr.mxu0 0.0
        %1191 = vmatpush1.msra.mxu0 0.0
        %1192 = vmatprep.subr.mxu0 0.0
        %1193 = vmatpush1.msra.mxu0 0.0
        %1194 = vmatprep.mubr.f32.mxu0 0.0
        %1195 = vmatmul.mubr.f32.gmra.mrb[0].mxu0 %v1128
        %v1196 = vpop.f32.mrb[0].mxu0
        %v1197 = vadd.f32 0.0, %v1196
        %v1198 = vpop.f32.mrb[0].mxu0
        %1199 = vdwg.mxu0
        %v1201 = vsel %vm357, %v731, 0
        %1203 = vmatprep.subr.mxu0 0.0
        %1204 = vmatpush1.msra.mxu0 %v353
        %1205 = vmatprep.subr.mxu0 0.0
        %1206 = vmatpush1.msra.mxu0 %v354
        %1207 = vmatprep.subr.mxu0 0.0
        %1208 = vmatpush1.msra.mxu0 %v355
        %1209 = vmatprep.subr.mxu0 0.0
        %1210 = vmatpush1.msra.mxu0 %v356
        %1211 = vmatprep.subr.mxu0 0.0
        %1212 = vmatpush1.msra.mxu0 0.0
        %1213 = vmatprep.subr.mxu0 0.0
        %1214 = vmatpush1.msra.mxu0 0.0
        %1215 = vmatprep.subr.mxu0 0.0
        %1216 = vmatpush1.msra.mxu0 0.0
        %1217 = vmatprep.subr.mxu0 0.0
        %1218 = vmatpush1.msra.mxu0 0.0
        %1219 = vmatprep.subr.mxu0 0.0
        %1220 = vmatpush1.msra.mxu0 0.0
        %1221 = vmatprep.subr.mxu0 0.0
        %1222 = vmatpush1.msra.mxu0 0.0
        %1223 = vmatprep.subr.mxu0 0.0
        %1224 = vmatpush1.msra.mxu0 0.0
        %1225 = vmatprep.subr.mxu0 0.0
        %1226 = vmatpush1.msra.mxu0 0.0
        %1227 = vmatprep.subr.mxu0 0.0
        %1228 = vmatpush1.msra.mxu0 0.0
        %1229 = vmatprep.subr.mxu0 0.0
        %1230 = vmatpush1.msra.mxu0 0.0
        %1231 = vmatprep.subr.mxu0 0.0
        %1232 = vmatpush1.msra.mxu0 0.0
        %1233 = vmatprep.subr.mxu0 0.0
        %1234 = vmatpush1.msra.mxu0 0.0
        %1235 = vmatprep.subr.mxu0 0.0
        %1236 = vmatpush1.msra.mxu0 0.0
        %1237 = vmatprep.subr.mxu0 0.0
        %1238 = vmatpush1.msra.mxu0 0.0
        %1239 = vmatprep.subr.mxu0 0.0
        %1240 = vmatpush1.msra.mxu0 0.0
        %1241 = vmatprep.subr.mxu0 0.0
        %1242 = vmatpush1.msra.mxu0 0.0
        %1243 = vmatprep.subr.mxu0 0.0
        %1244 = vmatpush1.msra.mxu0 0.0
        %1245 = vmatprep.subr.mxu0 0.0
        %1246 = vmatpush1.msra.mxu0 0.0
        %1247 = vmatprep.subr.mxu0 0.0
        %1248 = vmatpush1.msra.mxu0 0.0
        %1249 = vmatprep.subr.mxu0 0.0
        %1250 = vmatpush1.msra.mxu0 0.0
        %1251 = vmatprep.subr.mxu0 0.0
        %1252 = vmatpush1.msra.mxu0 0.0
        %1253 = vmatprep.subr.mxu0 0.0
        %1254 = vmatpush1.msra.mxu0 0.0
        %1255 = vmatprep.subr.mxu0 0.0
        %1256 = vmatpush1.msra.mxu0 0.0
        %1257 = vmatprep.subr.mxu0 0.0
        %1258 = vmatpush1.msra.mxu0 0.0
        %1259 = vmatprep.subr.mxu0 0.0
        %1260 = vmatpush1.msra.mxu0 0.0
        %1261 = vmatprep.subr.mxu0 0.0
        %1262 = vmatpush1.msra.mxu0 0.0
        %1263 = vmatprep.subr.mxu0 0.0
        %1264 = vmatpush1.msra.mxu0 0.0
        %1265 = vmatprep.subr.mxu0 0.0
        %1266 = vmatpush1.msra.mxu0 0.0
        %1267 = vmatprep.mubr.f32.mxu0 0.0
        %1268 = vmatmul.mubr.f32.gmra.mrb[0].mxu0 %v1201
        %v1269 = vpop.f32.mrb[0].mxu0
        %v1270 = vadd.f32 %v1197, %v1269
        %v1271 = vpop.f32.mrb[0].mxu0
        %1272 = vdwg.mxu0
        %s1273 = scalar_lea.vmem [#allocation5], 64
        %v1274 = vld [vmem:[%s1273] sm:$0xff]
        %v1275 = vld [vmem:[%s1273 + $0x8] sm:$0xff]
        %v1276 = vld [vmem:[%s1273 + $0x10] sm:$0xff]
        %v1277 = vld [vmem:[%s1273 + $0x18] sm:$0xff]
        %s1278 = scalar_lea.vmem [#allocation7], 64
        %v1279 = vld [vmem:[%s1278] sm:$0xff]
        %v1280 = vld [vmem:[%s1278 + $0x8] sm:$0xff]
        %v1281 = vld [vmem:[%s1278 + $0x10] sm:$0xff]
        %v1282 = vld [vmem:[%s1278 + $0x18] sm:$0xff]
        %s1283 = scalar_lea.vmem [#allocation8], 64
        %v1284 = vld [vmem:[%s1283] sm:$0xff]
        %v1285 = vld [vmem:[%s1283 + $0x8] sm:$0xff]
        %v1286 = vld [vmem:[%s1283 + $0x10] sm:$0xff]
        %v1287 = vld [vmem:[%s1283 + $0x18] sm:$0xff]
        %s1288 = scalar_lea.vmem [#allocation10], 64
        %v1289 = vld [vmem:[%s1288] sm:$0xff]
        %v1290 = vld [vmem:[%s1288 + $0x8] sm:$0xff]
        %v1291 = vld [vmem:[%s1288 + $0x10] sm:$0xff]
        %v1292 = vld [vmem:[%s1288 + $0x18] sm:$0xff]
        %1293 = vmatprep.subr.mxu0 0.0
        %1294 = vmatpush1.msra.mxu0 %v1274
        %1295 = vmatprep.subr.mxu0 0.0
        %1296 = vmatpush1.msra.mxu0 %v1275
        %1297 = vmatprep.subr.mxu0 0.0
        %1298 = vmatpush1.msra.mxu0 %v1276
        %1299 = vmatprep.subr.mxu0 0.0
        %1300 = vmatpush1.msra.mxu0 %v1277
        %1301 = vmatprep.subr.mxu0 0.0
        %1302 = vmatpush1.msra.mxu0 0.0
        %1303 = vmatprep.subr.mxu0 0.0
        %1304 = vmatpush1.msra.mxu0 0.0
        %1305 = vmatprep.subr.mxu0 0.0
        %1306 = vmatpush1.msra.mxu0 0.0
        %1307 = vmatprep.subr.mxu0 0.0
        %1308 = vmatpush1.msra.mxu0 0.0
        %1309 = vmatprep.subr.mxu0 0.0
        %1310 = vmatpush1.msra.mxu0 0.0
        %1311 = vmatprep.subr.mxu0 0.0
        %1312 = vmatpush1.msra.mxu0 0.0
        %1313 = vmatprep.subr.mxu0 0.0
        %1314 = vmatpush1.msra.mxu0 0.0
        %1315 = vmatprep.subr.mxu0 0.0
        %1316 = vmatpush1.msra.mxu0 0.0
        %1317 = vmatprep.subr.mxu0 0.0
        %1318 = vmatpush1.msra.mxu0 0.0
        %1319 = vmatprep.subr.mxu0 0.0
        %1320 = vmatpush1.msra.mxu0 0.0
        %1321 = vmatprep.subr.mxu0 0.0
        %1322 = vmatpush1.msra.mxu0 0.0
        %1323 = vmatprep.subr.mxu0 0.0
        %1324 = vmatpush1.msra.mxu0 0.0
        %1325 = vmatprep.subr.mxu0 0.0
        %1326 = vmatpush1.msra.mxu0 0.0
        %1327 = vmatprep.subr.mxu0 0.0
        %1328 = vmatpush1.msra.mxu0 0.0
        %1329 = vmatprep.subr.mxu0 0.0
        %1330 = vmatpush1.msra.mxu0 0.0
        %1331 = vmatprep.subr.mxu0 0.0
        %1332 = vmatpush1.msra.mxu0 0.0
        %1333 = vmatprep.subr.mxu0 0.0
        %1334 = vmatpush1.msra.mxu0 0.0
        %1335 = vmatprep.subr.mxu0 0.0
        %1336 = vmatpush1.msra.mxu0 0.0
        %1337 = vmatprep.subr.mxu0 0.0
        %1338 = vmatpush1.msra.mxu0 0.0
        %1339 = vmatprep.subr.mxu0 0.0
        %1340 = vmatpush1.msra.mxu0 0.0
        %1341 = vmatprep.subr.mxu0 0.0
        %1342 = vmatpush1.msra.mxu0 0.0
        %1343 = vmatprep.subr.mxu0 0.0
        %1344 = vmatpush1.msra.mxu0 0.0
        %1345 = vmatprep.subr.mxu0 0.0
        %1346 = vmatpush1.msra.mxu0 0.0
        %1347 = vmatprep.subr.mxu0 0.0
        %1348 = vmatpush1.msra.mxu0 0.0
        %1349 = vmatprep.subr.mxu0 0.0
        %1350 = vmatpush1.msra.mxu0 0.0
        %1351 = vmatprep.subr.mxu0 0.0
        %1352 = vmatpush1.msra.mxu0 0.0
        %1353 = vmatprep.subr.mxu0 0.0
        %1354 = vmatpush1.msra.mxu0 0.0
        %1355 = vmatprep.subr.mxu0 0.0
        %1356 = vmatpush1.msra.mxu0 0.0
        %1357 = vmatprep.mubr.f32.mxu0 0.0
        %1358 = vmatmul.mubr.f32.gmra.mrb[0].mxu0 %v359
        %v1359 = vpop.f32.mrb[0].mxu0
        %v1360 = vadd.f32 0.0, %v1359
        %v1361 = vpop.f32.mrb[0].mxu0
        %1362 = vdwg.mxu0
        %v1363 = vmul.f32 %v1360, 0.17677669
        %1364 = vmatprep.subr.mxu0 0.0
        %1365 = vmatpush1.msra.mxu0 %v1279
        %1366 = vmatprep.subr.mxu0 0.0
        %1367 = vmatpush1.msra.mxu0 %v1280
        %1368 = vmatprep.subr.mxu0 0.0
        %1369 = vmatpush1.msra.mxu0 %v1281
        %1370 = vmatprep.subr.mxu0 0.0
        %1371 = vmatpush1.msra.mxu0 %v1282
        %1372 = vmatprep.subr.mxu0 0.0
        %1373 = vmatpush1.msra.mxu0 0.0
        %1374 = vmatprep.subr.mxu0 0.0
        %1375 = vmatpush1.msra.mxu0 0.0
        %1376 = vmatprep.subr.mxu0 0.0
        %1377 = vmatpush1.msra.mxu0 0.0
        %1378 = vmatprep.subr.mxu0 0.0
        %1379 = vmatpush1.msra.mxu0 0.0
        %1380 = vmatprep.subr.mxu0 0.0
        %1381 = vmatpush1.msra.mxu0 0.0
        %1382 = vmatprep.subr.mxu0 0.0
        %1383 = vmatpush1.msra.mxu0 0.0
        %1384 = vmatprep.subr.mxu0 0.0
        %1385 = vmatpush1.msra.mxu0 0.0
        %1386 = vmatprep.subr.mxu0 0.0
        %1387 = vmatpush1.msra.mxu0 0.0
        %1388 = vmatprep.subr.mxu0 0.0
        %1389 = vmatpush1.msra.mxu0 0.0
        %1390 = vmatprep.subr.mxu0 0.0
        %1391 = vmatpush1.msra.mxu0 0.0
        %1392 = vmatprep.subr.mxu0 0.0
        %1393 = vmatpush1.msra.mxu0 0.0
        %1394 = vmatprep.subr.mxu0 0.0
        %1395 = vmatpush1.msra.mxu0 0.0
        %1396 = vmatprep.subr.mxu0 0.0
        %1397 = vmatpush1.msra.mxu0 0.0
        %1398 = vmatprep.subr.mxu0 0.0
        %1399 = vmatpush1.msra.mxu0 0.0
        %1400 = vmatprep.subr.mxu0 0.0
        %1401 = vmatpush1.msra.mxu0 0.0
        %1402 = vmatprep.subr.mxu0 0.0
        %1403 = vmatpush1.msra.mxu0 0.0
        %1404 = vmatprep.subr.mxu0 0.0
        %1405 = vmatpush1.msra.mxu0 0.0
        %1406 = vmatprep.subr.mxu0 0.0
        %1407 = vmatpush1.msra.mxu0 0.0
        %1408 = vmatprep.subr.mxu0 0.0
        %1409 = vmatpush1.msra.mxu0 0.0
        %1410 = vmatprep.subr.mxu0 0.0
        %1411 = vmatpush1.msra.mxu0 0.0
        %1412 = vmatprep.subr.mxu0 0.0
        %1413 = vmatpush1.msra.mxu0 0.0
        %1414 = vmatprep.subr.mxu0 0.0
        %1415 = vmatpush1.msra.mxu0 0.0
        %1416 = vmatprep.subr.mxu0 0.0
        %1417 = vmatpush1.msra.mxu0 0.0
        %1418 = vmatprep.subr.mxu0 0.0
        %1419 = vmatpush1.msra.mxu0 0.0
        %1420 = vmatprep.subr.mxu0 0.0
        %1421 = vmatpush1.msra.mxu0 0.0
        %1422 = vmatprep.subr.mxu0 0.0
        %1423 = vmatpush1.msra.mxu0 0.0
        %1424 = vmatprep.subr.mxu0 0.0
        %1425 = vmatpush1.msra.mxu0 0.0
        %1426 = vmatprep.subr.mxu0 0.0
        %1427 = vmatpush1.msra.mxu0 0.0
        %1428 = vmatprep.mubr.f32.mxu0 0.0
        %1429 = vmatmul.mubr.f32.gmra.mrb[0].mxu0 %v359
        %v1430 = vpop.f32.mrb[0].mxu0
        %v1431 = vadd.f32 0.0, %v1430
        %v1432 = vpop.f32.mrb[0].mxu0
        %1433 = vdwg.mxu0
        %1434 = vmatprep.subr.mxu0 0.0
        %1435 = vmatpush1.msra.mxu0 %v1284
        %1436 = vmatprep.subr.mxu0 0.0
        %1437 = vmatpush1.msra.mxu0 %v1285
        %1438 = vmatprep.subr.mxu0 0.0
        %1439 = vmatpush1.msra.mxu0 %v1286
        %1440 = vmatprep.subr.mxu0 0.0
        %1441 = vmatpush1.msra.mxu0 %v1287
        %1442 = vmatprep.subr.mxu0 0.0
        %1443 = vmatpush1.msra.mxu0 0.0
        %1444 = vmatprep.subr.mxu0 0.0
        %1445 = vmatpush1.msra.mxu0 0.0
        %1446 = vmatprep.subr.mxu0 0.0
        %1447 = vmatpush1.msra.mxu0 0.0
        %1448 = vmatprep.subr.mxu0 0.0
        %1449 = vmatpush1.msra.mxu0 0.0
        %1450 = vmatprep.subr.mxu0 0.0
        %1451 = vmatpush1.msra.mxu0 0.0
        %1452 = vmatprep.subr.mxu0 0.0
        %1453 = vmatpush1.msra.mxu0 0.0
        %1454 = vmatprep.subr.mxu0 0.0
        %1455 = vmatpush1.msra.mxu0 0.0
        %1456 = vmatprep.subr.mxu0 0.0
        %1457 = vmatpush1.msra.mxu0 0.0
        %1458 = vmatprep.subr.mxu0 0.0
        %1459 = vmatpush1.msra.mxu0 0.0
        %1460 = vmatprep.subr.mxu0 0.0
        %1461 = vmatpush1.msra.mxu0 0.0
        %1462 = vmatprep.subr.mxu0 0.0
        %1463 = vmatpush1.msra.mxu0 0.0
        %1464 = vmatprep.subr.mxu0 0.0
        %1465 = vmatpush1.msra.mxu0 0.0
        %1466 = vmatprep.subr.mxu0 0.0
        %1467 = vmatpush1.msra.mxu0 0.0
        %1468 = vmatprep.subr.mxu0 0.0
        %1469 = vmatpush1.msra.mxu0 0.0
        %1470 = vmatprep.subr.mxu0 0.0
        %1471 = vmatpush1.msra.mxu0 0.0
        %1472 = vmatprep.subr.mxu0 0.0
        %1473 = vmatpush1.msra.mxu0 0.0
        %1474 = vmatprep.subr.mxu0 0.0
        %1475 = vmatpush1.msra.mxu0 0.0
        %1476 = vmatprep.subr.mxu0 0.0
        %1477 = vmatpush1.msra.mxu0 0.0
        %1478 = vmatprep.subr.mxu0 0.0
        %1479 = vmatpush1.msra.mxu0 0.0
        %1480 = vmatprep.subr.mxu0 0.0
        %1481 = vmatpush1.msra.mxu0 0.0
        %1482 = vmatprep.subr.mxu0 0.0
        %1483 = vmatpush1.msra.mxu0 0.0
        %1484 = vmatprep.subr.mxu0 0.0
        %1485 = vmatpush1.msra.mxu0 0.0
        %1486 = vmatprep.subr.mxu0 0.0
        %1487 = vmatpush1.msra.mxu0 0.0
        %1488 = vmatprep.subr.mxu0 0.0
        %1489 = vmatpush1.msra.mxu0 0.0
        %1490 = vmatprep.subr.mxu0 0.0
        %1491 = vmatpush1.msra.mxu0 0.0
        %1492 = vmatprep.subr.mxu0 0.0
        %1493 = vmatpush1.msra.mxu0 0.0
        %1494 = vmatprep.subr.mxu0 0.0
        %1495 = vmatpush1.msra.mxu0 0.0
        %1496 = vmatprep.subr.mxu0 0.0
        %1497 = vmatpush1.msra.mxu0 0.0
        %1498 = vmatprep.mubr.f32.mxu0 0.0
        %1499 = vmatmul.mubr.f32.gmra.mrb[0].mxu0 %v359
        %v1500 = vpop.f32.mrb[0].mxu0
        %v1501 = vadd.f32 0.0, %v1500
        %v1502 = vpop.f32.mrb[0].mxu0
        %1503 = vdwg.mxu0
        %s1504 = scalar_lea.vmem [#allocation11], 16
        %v1505 = vld [vmem:[%s1504] sm:$0xff]
        %v1507 = vsel %vm357, %v1363, 0
        %v1510 = vsel %vm357, %v1431, 0
        %1512 = vmatprep.subr.mxu0 0.0
        %1513 = vmatpush1.xpose.msra.mxu0 %v1510
        %1514 = vmatprep.subr.mxu0 0.0
        %1515 = vmatpush1.xpose.msra.mxu0 0.0
        %1516 = vmatprep.subr.mxu0 0.0
        %1517 = vmatpush1.xpose.msra.mxu0 0.0
        %1518 = vmatprep.subr.mxu0 0.0
        %1519 = vmatpush1.xpose.msra.mxu0 0.0
        %1520 = vmatprep.subr.mxu0 0.0
        %1521 = vmatpush1.xpose.msra.mxu0 0.0
        %1522 = vmatprep.subr.mxu0 0.0
        %1523 = vmatpush1.xpose.msra.mxu0 0.0
        %1524 = vmatprep.subr.mxu0 0.0
        %1525 = vmatpush1.xpose.msra.mxu0 0.0
        %1526 = vmatprep.subr.mxu0 0.0
        %1527 = vmatpush1.xpose.msra.mxu0 0.0
        %1528 = vmatprep.subr.mxu0 0.0
        %1529 = vmatpush1.xpose.msra.mxu0 0.0
        %1530 = vmatprep.subr.mxu0 0.0
        %1531 = vmatpush1.xpose.msra.mxu0 0.0
        %1532 = vmatprep.subr.mxu0 0.0
        %1533 = vmatpush1.xpose.msra.mxu0 0.0
        %1534 = vmatprep.subr.mxu0 0.0
        %1535 = vmatpush1.xpose.msra.mxu0 0.0
        %1536 = vmatprep.subr.mxu0 0.0
        %1537 = vmatpush1.xpose.msra.mxu0 0.0
        %1538 = vmatprep.subr.mxu0 0.0
        %1539 = vmatpush1.xpose.msra.mxu0 0.0
        %1540 = vmatprep.subr.mxu0 0.0
        %1541 = vmatpush1.xpose.msra.mxu0 0.0
        %1542 = vmatprep.subr.mxu0 0.0
        %1543 = vmatpush1.xpose.msra.mxu0 0.0
        %1544 = vmatprep.subr.mxu0 0.0
        %1545 = vmatpush1.xpose.msra.mxu0 0.0
        %1546 = vmatprep.subr.mxu0 0.0
        %1547 = vmatpush1.xpose.msra.mxu0 0.0
        %1548 = vmatprep.subr.mxu0 0.0
        %1549 = vmatpush1.xpose.msra.mxu0 0.0
        %1550 = vmatprep.subr.mxu0 0.0
        %1551 = vmatpush1.xpose.msra.mxu0 0.0
        %1552 = vmatprep.subr.mxu0 0.0
        %1553 = vmatpush1.xpose.msra.mxu0 0.0
        %1554 = vmatprep.subr.mxu0 0.0
        %1555 = vmatpush1.xpose.msra.mxu0 0.0
        %1556 = vmatprep.subr.mxu0 0.0
        %1557 = vmatpush1.xpose.msra.mxu0 0.0
        %1558 = vmatprep.subr.mxu0 0.0
        %1559 = vmatpush1.xpose.msra.mxu0 0.0
        %1560 = vmatprep.subr.mxu0 0.0
        %1561 = vmatpush1.xpose.msra.mxu0 0.0
        %1562 = vmatprep.subr.mxu0 0.0
        %1563 = vmatpush1.xpose.msra.mxu0 0.0
        %1564 = vmatprep.subr.mxu0 0.0
        %1565 = vmatpush1.xpose.msra.mxu0 0.0
        %1566 = vmatprep.subr.mxu0 0.0
        %1567 = vmatpush1.xpose.msra.mxu0 0.0
        %1568 = vmatprep.subr.mxu0 0.0
        %1569 = vmatpush1.xpose.msra.mxu0 0.0
        %1570 = vmatprep.subr.mxu0 0.0
        %1571 = vmatpush1.xpose.msra.mxu0 0.0
        %1572 = vmatprep.subr.mxu0 0.0
        %1573 = vmatpush1.xpose.msra.mxu0 0.0
        %1574 = vmatprep.subr.mxu0 0.0
        %1575 = vmatpush1.xpose.msra.mxu0 0.0
        %1576 = vmatprep.mubr.f32.mxu0 0.0
        %1577 = vmatmul.mubr.f32.gmra.mrb[0].mxu0 %v1507
        %v1578 = vpop.f32.mrb[0].mxu0
        %v1579 = vadd.f32 %v1505, %v1578
        %v1580 = vpop.f32.mrb[0].mxu0
        %1581 = vdwg.mxu0
        %v1582 = vsel %vm649, %v1579, -inf
        %1583 = vmax.xlane.f32.xlu0 %v1582
        %v1584 = vpop.xlane.xlu0 %1583
        %v1585 = vsub.f32 %v1579, %v1584
        %v1586 = vmul.f32 %v1585, 1.442695
        %v1587 = vpow.pop %v1586
        %v1588 = vsel %vm649, %v1587, 0.0
        %1589 = vadd.xlane.f32.xlu0 %v1588
        %v1590 = vpop.xlane.xlu0 %1589
        %v1591 = vrcp.pop %v1590
        %v1592 = vmul.f32 %v1587, %v1591
        %v1594 = vsel %vm649, %v1592, 0
        %1596 = vmatprep.subr.mxu0 0.0
        %1597 = vmatpush1.msra.mxu0 %v1501
        %1598 = vmatprep.subr.mxu0 0.0
        %1599 = vmatpush1.msra.mxu0 0.0
        %1600 = vmatprep.subr.mxu0 0.0
        %1601 = vmatpush1.msra.mxu0 0.0
        %1602 = vmatprep.subr.mxu0 0.0
        %1603 = vmatpush1.msra.mxu0 0.0
        %1604 = vmatprep.subr.mxu0 0.0
        %1605 = vmatpush1.msra.mxu0 0.0
        %1606 = vmatprep.subr.mxu0 0.0
        %1607 = vmatpush1.msra.mxu0 0.0
        %1608 = vmatprep.subr.mxu0 0.0
        %1609 = vmatpush1.msra.mxu0 0.0
        %1610 = vmatprep.subr.mxu0 0.0
        %1611 = vmatpush1.msra.mxu0 0.0
        %1612 = vmatprep.subr.mxu0 0.0
        %1613 = vmatpush1.msra.mxu0 0.0
        %1614 = vmatprep.subr.mxu0 0.0
        %1615 = vmatpush1.msra.mxu0 0.0
        %1616 = vmatprep.subr.mxu0 0.0
        %1617 = vmatpush1.msra.mxu0 0.0
        %1618 = vmatprep.subr.mxu0 0.0
        %1619 = vmatpush1.msra.mxu0 0.0
        %1620 = vmatprep.subr.mxu0 0.0
        %1621 = vmatpush1.msra.mxu0 0.0
        %1622 = vmatprep.subr.mxu0 0.0
        %1623 = vmatpush1.msra.mxu0 0.0
        %1624 = vmatprep.subr.mxu0 0.0
        %1625 = vmatpush1.msra.mxu0 0.0
        %1626 = vmatprep.subr.mxu0 0.0
        %1627 = vmatpush1.msra.mxu0 0.0
        %1628 = vmatprep.subr.mxu0 0.0
        %1629 = vmatpush1.msra.mxu0 0.0
        %1630 = vmatprep.subr.mxu0 0.0
        %1631 = vmatpush1.msra.mxu0 0.0
        %1632 = vmatprep.subr.mxu0 0.0
        %1633 = vmatpush1.msra.mxu0 0.0
        %1634 = vmatprep.subr.mxu0 0.0
        %1635 = vmatpush1.msra.mxu0 0.0
        %1636 = vmatprep.subr.mxu0 0.0
        %1637 = vmatpush1.msra.mxu0 0.0
        %1638 = vmatprep.subr.mxu0 0.0
        %1639 = vmatpush1.msra.mxu0 0.0
        %1640 = vmatprep.subr.mxu0 0.0
        %1641 = vmatpush1.msra.mxu0 0.0
        %1642 = vmatprep.subr.mxu0 0.0
        %1643 = vmatpush1.msra.mxu0 0.0
        %1644 = vmatprep.subr.mxu0 0.0
        %1645 = vmatpush1.msra.mxu0 0.0
        %1646 = vmatprep.subr.mxu0 0.0
        %1647 = vmatpush1.msra.mxu0 0.0
        %1648 = vmatprep.subr.mxu0 0.0
        %1649 = vmatpush1.msra.mxu0 0.0
        %1650 = vmatprep.subr.mxu0 0.0
        %1651 = vmatpush1.msra.mxu0 0.0
        %1652 = vmatprep.subr.mxu0 0.0
        %1653 = vmatpush1.msra.mxu0 0.0
        %1654 = vmatprep.subr.mxu0 0.0
        %1655 = vmatpush1.msra.mxu0 0.0
        %1656 = vmatprep.subr.mxu0 0.0
        %1657 = vmatpush1.msra.mxu0 0.0
        %1658 = vmatprep.subr.mxu0 0.0
        %1659 = vmatpush1.msra.mxu0 0.0
        %1660 = vmatprep.mubr.f32.mxu0 0.0
        %1661 = vmatmul.mubr.f32.gmra.mrb[0].mxu0 %v1594
        %v1662 = vpop.f32.mrb[0].mxu0
        %v1663 = vadd.f32 0.0, %v1662
        %v1664 = vpop.f32.mrb[0].mxu0
        %1665 = vdwg.mxu0
        %v1667 = vsel %vm357, %v1663, 0
        %1669 = vmatprep.subr.mxu0 0.0
        %1670 = vmatpush1.msra.mxu0 %v1289
        %1671 = vmatprep.subr.mxu0 0.0
        %1672 = vmatpush1.msra.mxu0 %v1290
        %1673 = vmatprep.subr.mxu0 0.0
        %1674 = vmatpush1.msra.mxu0 %v1291
        %1675 = vmatprep.subr.mxu0 0.0
        %1676 = vmatpush1.msra.mxu0 %v1292
        %1677 = vmatprep.subr.mxu0 0.0
        %1678 = vmatpush1.msra.mxu0 0.0
        %1679 = vmatprep.subr.mxu0 0.0
        %1680 = vmatpush1.msra.mxu0 0.0
        %1681 = vmatprep.subr.mxu0 0.0
        %1682 = vmatpush1.msra.mxu0 0.0
        %1683 = vmatprep.subr.mxu0 0.0
        %1684 = vmatpush1.msra.mxu0 0.0
        %1685 = vmatprep.subr.mxu0 0.0
        %1686 = vmatpush1.msra.mxu0 0.0
        %1687 = vmatprep.subr.mxu0 0.0
        %1688 = vmatpush1.msra.mxu0 0.0
        %1689 = vmatprep.subr.mxu0 0.0
        %1690 = vmatpush1.msra.mxu0 0.0
        %1691 = vmatprep.subr.mxu0 0.0
        %1692 = vmatpush1.msra.mxu0 0.0
        %1693 = vmatprep.subr.mxu0 0.0
        %1694 = vmatpush1.msra.mxu0 0.0
        %1695 = vmatprep.subr.mxu0 0.0
        %1696 = vmatpush1.msra.mxu0 0.0
        %1697 = vmatprep.subr.mxu0 0.0
        %1698 = vmatpush1.msra.mxu0 0.0
        %1699 = vmatprep.subr.mxu0 0.0
        %1700 = vmatpush1.msra.mxu0 0.0
        %1701 = vmatprep.subr.mxu0 0.0
        %1702 = vmatpush1.msra.mxu0 0.0
        %1703 = vmatprep.subr.mxu0 0.0
        %1704 = vmatpush1.msra.mxu0 0.0
        %1705 = vmatprep.subr.mxu0 0.0
        %1706 = vmatpush1.msra.mxu0 0.0
        %1707 = vmatprep.subr.mxu0 0.0
        %1708 = vmatpush1.msra.mxu0 0.0
        %1709 = vmatprep.subr.mxu0 0.0
        %1710 = vmatpush1.msra.mxu0 0.0
        %1711 = vmatprep.subr.mxu0 0.0
        %1712 = vmatpush1.msra.mxu0 0.0
        %1713 = vmatprep.subr.mxu0 0.0
        %1714 = vmatpush1.msra.mxu0 0.0
        %1715 = vmatprep.subr.mxu0 0.0
        %1716 = vmatpush1.msra.mxu0 0.0
        %1717 = vmatprep.subr.mxu0 0.0
        %1718 = vmatpush1.msra.mxu0 0.0
        %1719 = vmatprep.subr.mxu0 0.0
        %1720 = vmatpush1.msra.mxu0 0.0
        %1721 = vmatprep.subr.mxu0 0.0
        %1722 = vmatpush1.msra.mxu0 0.0
        %1723 = vmatprep.subr.mxu0 0.0
        %1724 = vmatpush1.msra.mxu0 0.0
        %1725 = vmatprep.subr.mxu0 0.0
        %1726 = vmatpush1.msra.mxu0 0.0
        %1727 = vmatprep.subr.mxu0 0.0
        %1728 = vmatpush1.msra.mxu0 0.0
        %1729 = vmatprep.subr.mxu0 0.0
        %1730 = vmatpush1.msra.mxu0 0.0
        %1731 = vmatprep.subr.mxu0 0.0
        %1732 = vmatpush1.msra.mxu0 0.0
        %1733 = vmatprep.mubr.f32.mxu0 0.0
        %1734 = vmatmul.mubr.f32.gmra.mrb[0].mxu0 %v1667
        %v1735 = vpop.f32.mrb[0].mxu0
        %v1736 = vadd.f32 0.0, %v1735
        %v1737 = vpop.f32.mrb[0].mxu0
        %1738 = vdwg.mxu0
        %v1739 = vadd.f32 %v1270, %v1736
        %s1740 = scalar_lea.vmem [#allocation5], 96
        %v1741 = vld [vmem:[%s1740] sm:$0xff]
        %v1742 = vld [vmem:[%s1740 + $0x8] sm:$0xff]
        %v1743 = vld [vmem:[%s1740 + $0x10] sm:$0xff]
        %v1744 = vld [vmem:[%s1740 + $0x18] sm:$0xff]
        %s1745 = scalar_lea.vmem [#allocation7], 96
        %v1746 = vld [vmem:[%s1745] sm:$0xff]
        %v1747 = vld [vmem:[%s1745 + $0x8] sm:$0xff]
        %v1748 = vld [vmem:[%s1745 + $0x10] sm:$0xff]
        %v1749 = vld [vmem:[%s1745 + $0x18] sm:$0xff]
        %s1750 = scalar_lea.vmem [#allocation8], 96
        %v1751 = vld [vmem:[%s1750] sm:$0xff]
        %v1752 = vld [vmem:[%s1750 + $0x8] sm:$0xff]
        %v1753 = vld [vmem:[%s1750 + $0x10] sm:$0xff]
        %v1754 = vld [vmem:[%s1750 + $0x18] sm:$0xff]
        %s1755 = scalar_lea.vmem [#allocation10], 96
        %v1756 = vld [vmem:[%s1755] sm:$0xff]
        %v1757 = vld [vmem:[%s1755 + $0x8] sm:$0xff]
        %v1758 = vld [vmem:[%s1755 + $0x10] sm:$0xff]
        %v1759 = vld [vmem:[%s1755 + $0x18] sm:$0xff]
        %1760 = vmatprep.subr.mxu0 0.0
        %1761 = vmatpush1.msra.mxu0 %v1741
        %1762 = vmatprep.subr.mxu0 0.0
        %1763 = vmatpush1.msra.mxu0 %v1742
        %1764 = vmatprep.subr.mxu0 0.0
        %1765 = vmatpush1.msra.mxu0 %v1743
        %1766 = vmatprep.subr.mxu0 0.0
        %1767 = vmatpush1.msra.mxu0 %v1744
        %1768 = vmatprep.subr.mxu0 0.0
        %1769 = vmatpush1.msra.mxu0 0.0
        %1770 = vmatprep.subr.mxu0 0.0
        %1771 = vmatpush1.msra.mxu0 0.0
        %1772 = vmatprep.subr.mxu0 0.0
        %1773 = vmatpush1.msra.mxu0 0.0
        %1774 = vmatprep.subr.mxu0 0.0
        %1775 = vmatpush1.msra.mxu0 0.0
        %1776 = vmatprep.subr.mxu0 0.0
        %1777 = vmatpush1.msra.mxu0 0.0
        %1778 = vmatprep.subr.mxu0 0.0
        %1779 = vmatpush1.msra.mxu0 0.0
        %1780 = vmatprep.subr.mxu0 0.0
        %1781 = vmatpush1.msra.mxu0 0.0
        %1782 = vmatprep.subr.mxu0 0.0
        %1783 = vmatpush1.msra.mxu0 0.0
        %1784 = vmatprep.subr.mxu0 0.0
        %1785 = vmatpush1.msra.mxu0 0.0
        %1786 = vmatprep.subr.mxu0 0.0
        %1787 = vmatpush1.msra.mxu0 0.0
        %1788 = vmatprep.subr.mxu0 0.0
        %1789 = vmatpush1.msra.mxu0 0.0
        %1790 = vmatprep.subr.mxu0 0.0
        %1791 = vmatpush1.msra.mxu0 0.0
        %1792 = vmatprep.subr.mxu0 0.0
        %1793 = vmatpush1.msra.mxu0 0.0
        %1794 = vmatprep.subr.mxu0 0.0
        %1795 = vmatpush1.msra.mxu0 0.0
        %1796 = vmatprep.subr.mxu0 0.0
        %1797 = vmatpush1.msra.mxu0 0.0
        %1798 = vmatprep.subr.mxu0 0.0
        %1799 = vmatpush1.msra.mxu0 0.0
        %1800 = vmatprep.subr.mxu0 0.0
        %1801 = vmatpush1.msra.mxu0 0.0
        %1802 = vmatprep.subr.mxu0 0.0
        %1803 = vmatpush1.msra.mxu0 0.0
        %1804 = vmatprep.subr.mxu0 0.0
        %1805 = vmatpush1.msra.mxu0 0.0
        %1806 = vmatprep.subr.mxu0 0.0
        %1807 = vmatpush1.msra.mxu0 0.0
        %1808 = vmatprep.subr.mxu0 0.0
        %1809 = vmatpush1.msra.mxu0 0.0
        %1810 = vmatprep.subr.mxu0 0.0
        %1811 = vmatpush1.msra.mxu0 0.0
        %1812 = vmatprep.subr.mxu0 0.0
        %1813 = vmatpush1.msra.mxu0 0.0
        %1814 = vmatprep.subr.mxu0 0.0
        %1815 = vmatpush1.msra.mxu0 0.0
        %1816 = vmatprep.subr.mxu0 0.0
        %1817 = vmatpush1.msra.mxu0 0.0
        %1818 = vmatprep.subr.mxu0 0.0
        %1819 = vmatpush1.msra.mxu0 0.0
        %1820 = vmatprep.subr.mxu0 0.0
        %1821 = vmatpush1.msra.mxu0 0.0
        %1822 = vmatprep.subr.mxu0 0.0
        %1823 = vmatpush1.msra.mxu0 0.0
        %1824 = vmatprep.mubr.f32.mxu0 0.0
        %1825 = vmatmul.mubr.f32.gmra.mrb[0].mxu0 %v359
        %v1826 = vpop.f32.mrb[0].mxu0
        %v1827 = vadd.f32 0.0, %v1826
        %v1828 = vpop.f32.mrb[0].mxu0
        %1829 = vdwg.mxu0
        %v1830 = vmul.f32 %v1827, 0.17677669
        %1831 = vmatprep.subr.mxu0 0.0
        %1832 = vmatpush1.msra.mxu0 %v1746
        %1833 = vmatprep.subr.mxu0 0.0
        %1834 = vmatpush1.msra.mxu0 %v1747
        %1835 = vmatprep.subr.mxu0 0.0
        %1836 = vmatpush1.msra.mxu0 %v1748
        %1837 = vmatprep.subr.mxu0 0.0
        %1838 = vmatpush1.msra.mxu0 %v1749
        %1839 = vmatprep.subr.mxu0 0.0
        %1840 = vmatpush1.msra.mxu0 0.0
        %1841 = vmatprep.subr.mxu0 0.0
        %1842 = vmatpush1.msra.mxu0 0.0
        %1843 = vmatprep.subr.mxu0 0.0
        %1844 = vmatpush1.msra.mxu0 0.0
        %1845 = vmatprep.subr.mxu0 0.0
        %1846 = vmatpush1.msra.mxu0 0.0
        %1847 = vmatprep.subr.mxu0 0.0
        %1848 = vmatpush1.msra.mxu0 0.0
        %1849 = vmatprep.subr.mxu0 0.0
        %1850 = vmatpush1.msra.mxu0 0.0
        %1851 = vmatprep.subr.mxu0 0.0
        %1852 = vmatpush1.msra.mxu0 0.0
        %1853 = vmatprep.subr.mxu0 0.0
        %1854 = vmatpush1.msra.mxu0 0.0
        %1855 = vmatprep.subr.mxu0 0.0
        %1856 = vmatpush1.msra.mxu0 0.0
        %1857 = vmatprep.subr.mxu0 0.0
        %1858 = vmatpush1.msra.mxu0 0.0
        %1859 = vmatprep.subr.mxu0 0.0
        %1860 = vmatpush1.msra.mxu0 0.0
        %1861 = vmatprep.subr.mxu0 0.0
        %1862 = vmatpush1.msra.mxu0 0.0
        %1863 = vmatprep.subr.mxu0 0.0
        %1864 = vmatpush1.msra.mxu0 0.0
        %1865 = vmatprep.subr.mxu0 0.0
        %1866 = vmatpush1.msra.mxu0 0.0
        %1867 = vmatprep.subr.mxu0 0.0
        %1868 = vmatpush1.msra.mxu0 0.0
        %1869 = vmatprep.subr.mxu0 0.0
        %1870 = vmatpush1.msra.mxu0 0.0
        %1871 = vmatprep.subr.mxu0 0.0
        %1872 = vmatpush1.msra.mxu0 0.0
        %1873 = vmatprep.subr.mxu0 0.0
        %1874 = vmatpush1.msra.mxu0 0.0
        %1875 = vmatprep.subr.mxu0 0.0
        %1876 = vmatpush1.msra.mxu0 0.0
        %1877 = vmatprep.subr.mxu0 0.0
        %1878 = vmatpush1.msra.mxu0 0.0
        %1879 = vmatprep.subr.mxu0 0.0
        %1880 = vmatpush1.msra.mxu0 0.0
        %1881 = vmatprep.subr.mxu0 0.0
        %1882 = vmatpush1.msra.mxu0 0.0
        %1883 = vmatprep.subr.mxu0 0.0
        %1884 = vmatpush1.msra.mxu0 0.0
        %1885 = vmatprep.subr.mxu0 0.0
        %1886 = vmatpush1.msra.mxu0 0.0
        %1887 = vmatprep.subr.mxu0 0.0
        %1888 = vmatpush1.msra.mxu0 0.0
        %1889 = vmatprep.subr.mxu0 0.0
        %1890 = vmatpush1.msra.mxu0 0.0
        %1891 = vmatprep.subr.mxu0 0.0
        %1892 = vmatpush1.msra.mxu0 0.0
        %1893 = vmatprep.subr.mxu0 0.0
        %1894 = vmatpush1.msra.mxu0 0.0
        %1895 = vmatprep.mubr.f32.mxu0 0.0
        %1896 = vmatmul.mubr.f32.gmra.mrb[0].mxu0 %v359
        %v1897 = vpop.f32.mrb[0].mxu0
        %v1898 = vadd.f32 0.0, %v1897
        %v1899 = vpop.f32.mrb[0].mxu0
        %1900 = vdwg.mxu0
        %1901 = vmatprep.subr.mxu0 0.0
        %1902 = vmatpush1.msra.mxu0 %v1751
        %1903 = vmatprep.subr.mxu0 0.0
        %1904 = vmatpush1.msra.mxu0 %v1752
        %1905 = vmatprep.subr.mxu0 0.0
        %1906 = vmatpush1.msra.mxu0 %v1753
        %1907 = vmatprep.subr.mxu0 0.0
        %1908 = vmatpush1.msra.mxu0 %v1754
        %1909 = vmatprep.subr.mxu0 0.0
        %1910 = vmatpush1.msra.mxu0 0.0
        %1911 = vmatprep.subr.mxu0 0.0
        %1912 = vmatpush1.msra.mxu0 0.0
        %1913 = vmatprep.subr.mxu0 0.0
        %1914 = vmatpush1.msra.mxu0 0.0
        %1915 = vmatprep.subr.mxu0 0.0
        %1916 = vmatpush1.msra.mxu0 0.0
        %1917 = vmatprep.subr.mxu0 0.0
        %1918 = vmatpush1.msra.mxu0 0.0
        %1919 = vmatprep.subr.mxu0 0.0
        %1920 = vmatpush1.msra.mxu0 0.0
        %1921 = vmatprep.subr.mxu0 0.0
        %1922 = vmatpush1.msra.mxu0 0.0
        %1923 = vmatprep.subr.mxu0 0.0
        %1924 = vmatpush1.msra.mxu0 0.0
        %1925 = vmatprep.subr.mxu0 0.0
        %1926 = vmatpush1.msra.mxu0 0.0
        %1927 = vmatprep.subr.mxu0 0.0
        %1928 = vmatpush1.msra.mxu0 0.0
        %1929 = vmatprep.subr.mxu0 0.0
        %1930 = vmatpush1.msra.mxu0 0.0
        %1931 = vmatprep.subr.mxu0 0.0
        %1932 = vmatpush1.msra.mxu0 0.0
        %1933 = vmatprep.subr.mxu0 0.0
        %1934 = vmatpush1.msra.mxu0 0.0
        %1935 = vmatprep.subr.mxu0 0.0
        %1936 = vmatpush1.msra.mxu0 0.0
        %1937 = vmatprep.subr.mxu0 0.0
        %1938 = vmatpush1.msra.mxu0 0.0
        %1939 = vmatprep.subr.mxu0 0.0
        %1940 = vmatpush1.msra.mxu0 0.0
        %1941 = vmatprep.subr.mxu0 0.0
        %1942 = vmatpush1.msra.mxu0 0.0
        %1943 = vmatprep.subr.mxu0 0.0
        %1944 = vmatpush1.msra.mxu0 0.0
        %1945 = vmatprep.subr.mxu0 0.0
        %1946 = vmatpush1.msra.mxu0 0.0
        %1947 = vmatprep.subr.mxu0 0.0
        %1948 = vmatpush1.msra.mxu0 0.0
        %1949 = vmatprep.subr.mxu0 0.0
        %1950 = vmatpush1.msra.mxu0 0.0
        %1951 = vmatprep.subr.mxu0 0.0
        %1952 = vmatpush1.msra.mxu0 0.0
        %1953 = vmatprep.subr.mxu0 0.0
        %1954 = vmatpush1.msra.mxu0 0.0
        %1955 = vmatprep.subr.mxu0 0.0
        %1956 = vmatpush1.msra.mxu0 0.0
        %1957 = vmatprep.subr.mxu0 0.0
        %1958 = vmatpush1.msra.mxu0 0.0
        %1959 = vmatprep.subr.mxu0 0.0
        %1960 = vmatpush1.msra.mxu0 0.0
        %1961 = vmatprep.subr.mxu0 0.0
        %1962 = vmatpush1.msra.mxu0 0.0
        %1963 = vmatprep.subr.mxu0 0.0
        %1964 = vmatpush1.msra.mxu0 0.0
        %1965 = vmatprep.mubr.f32.mxu0 0.0
        %1966 = vmatmul.mubr.f32.gmra.mrb[0].mxu0 %v359
        %v1967 = vpop.f32.mrb[0].mxu0
        %v1968 = vadd.f32 0.0, %v1967
        %v1969 = vpop.f32.mrb[0].mxu0
        %1970 = vdwg.mxu0
        %s1971 = scalar_lea.vmem [#allocation11], 24
        %v1972 = vld [vmem:[%s1971] sm:$0xff]
        %v1974 = vsel %vm357, %v1830, 0
        %v1977 = vsel %vm357, %v1898, 0
        %1979 = vmatprep.subr.mxu0 0.0
        %1980 = vmatpush1.xpose.msra.mxu0 %v1977
        %1981 = vmatprep.subr.mxu0 0.0
        %1982 = vmatpush1.xpose.msra.mxu0 0.0
        %1983 = vmatprep.subr.mxu0 0.0
        %1984 = vmatpush1.xpose.msra.mxu0 0.0
        %1985 = vmatprep.subr.mxu0 0.0
        %1986 = vmatpush1.xpose.msra.mxu0 0.0
        %1987 = vmatprep.subr.mxu0 0.0
        %1988 = vmatpush1.xpose.msra.mxu0 0.0
        %1989 = vmatprep.subr.mxu0 0.0
        %1990 = vmatpush1.xpose.msra.mxu0 0.0
        %1991 = vmatprep.subr.mxu0 0.0
        %1992 = vmatpush1.xpose.msra.mxu0 0.0
        %1993 = vmatprep.subr.mxu0 0.0
        %1994 = vmatpush1.xpose.msra.mxu0 0.0
        %1995 = vmatprep.subr.mxu0 0.0
        %1996 = vmatpush1.xpose.msra.mxu0 0.0
        %1997 = vmatprep.subr.mxu0 0.0
        %1998 = vmatpush1.xpose.msra.mxu0 0.0
        %1999 = vmatprep.subr.mxu0 0.0
        %2000 = vmatpush1.xpose.msra.mxu0 0.0
        %2001 = vmatprep.subr.mxu0 0.0
        %2002 = vmatpush1.xpose.msra.mxu0 0.0
        %2003 = vmatprep.subr.mxu0 0.0
        %2004 = vmatpush1.xpose.msra.mxu0 0.0
        %2005 = vmatprep.subr.mxu0 0.0
        %2006 = vmatpush1.xpose.msra.mxu0 0.0
        %2007 = vmatprep.subr.mxu0 0.0
        %2008 = vmatpush1.xpose.msra.mxu0 0.0
        %2009 = vmatprep.subr.mxu0 0.0
        %2010 = vmatpush1.xpose.msra.mxu0 0.0
        %2011 = vmatprep.subr.mxu0 0.0
        %2012 = vmatpush1.xpose.msra.mxu0 0.0
        %2013 = vmatprep.subr.mxu0 0.0
        %2014 = vmatpush1.xpose.msra.mxu0 0.0
        %2015 = vmatprep.subr.mxu0 0.0
        %2016 = vmatpush1.xpose.msra.mxu0 0.0
        %2017 = vmatprep.subr.mxu0 0.0
        %2018 = vmatpush1.xpose.msra.mxu0 0.0
        %2019 = vmatprep.subr.mxu0 0.0
        %2020 = vmatpush1.xpose.msra.mxu0 0.0
        %2021 = vmatprep.subr.mxu0 0.0
        %2022 = vmatpush1.xpose.msra.mxu0 0.0
        %2023 = vmatprep.subr.mxu0 0.0
        %2024 = vmatpush1.xpose.msra.mxu0 0.0
        %2025 = vmatprep.subr.mxu0 0.0
        %2026 = vmatpush1.xpose.msra.mxu0 0.0
        %2027 = vmatprep.subr.mxu0 0.0
        %2028 = vmatpush1.xpose.msra.mxu0 0.0
        %2029 = vmatprep.subr.mxu0 0.0
        %2030 = vmatpush1.xpose.msra.mxu0 0.0
        %2031 = vmatprep.subr.mxu0 0.0
        %2032 = vmatpush1.xpose.msra.mxu0 0.0
        %2033 = vmatprep.subr.mxu0 0.0
        %2034 = vmatpush1.xpose.msra.mxu0 0.0
        %2035 = vmatprep.subr.mxu0 0.0
        %2036 = vmatpush1.xpose.msra.mxu0 0.0
        %2037 = vmatprep.subr.mxu0 0.0
        %2038 = vmatpush1.xpose.msra.mxu0 0.0
        %2039 = vmatprep.subr.mxu0 0.0
        %2040 = vmatpush1.xpose.msra.mxu0 0.0
        %2041 = vmatprep.subr.mxu0 0.0
        %2042 = vmatpush1.xpose.msra.mxu0 0.0
        %2043 = vmatprep.mubr.f32.mxu0 0.0
        %2044 = vmatmul.mubr.f32.gmra.mrb[0].mxu0 %v1974
        %v2045 = vpop.f32.mrb[0].mxu0
        %v2046 = vadd.f32 %v1972, %v2045
        %v2047 = vpop.f32.mrb[0].mxu0
        %2048 = vdwg.mxu0
        %v2049 = vsel %vm649, %v2046, -inf
        %2050 = vmax.xlane.f32.xlu0 %v2049
        %v2051 = vpop.xlane.xlu0 %2050
        %v2052 = vsub.f32 %v2046, %v2051
        %v2053 = vmul.f32 %v2052, 1.442695
        %v2054 = vpow.pop %v2053
        %v2055 = vsel %vm649, %v2054, 0.0
        %2056 = vadd.xlane.f32.xlu0 %v2055
        %v2057 = vpop.xlane.xlu0 %2056
        %v2058 = vrcp.pop %v2057
        %v2059 = vmul.f32 %v2054, %v2058
        %v2061 = vsel %vm649, %v2059, 0
        %2063 = vmatprep.subr.mxu0 0.0
        %2064 = vmatpush1.msra.mxu0 %v1968
        %2065 = vmatprep.subr.mxu0 0.0
        %2066 = vmatpush1.msra.mxu0 0.0
        %2067 = vmatprep.subr.mxu0 0.0
        %2068 = vmatpush1.msra.mxu0 0.0
        %2069 = vmatprep.subr.mxu0 0.0
        %2070 = vmatpush1.msra.mxu0 0.0
        %2071 = vmatprep.subr.mxu0 0.0
        %2072 = vmatpush1.msra.mxu0 0.0
        %2073 = vmatprep.subr.mxu0 0.0
        %2074 = vmatpush1.msra.mxu0 0.0
        %2075 = vmatprep.subr.mxu0 0.0
        %2076 = vmatpush1.msra.mxu0 0.0
        %2077 = vmatprep.subr.mxu0 0.0
        %2078 = vmatpush1.msra.mxu0 0.0
        %2079 = vmatprep.subr.mxu0 0.0
        %2080 = vmatpush1.msra.mxu0 0.0
        %2081 = vmatprep.subr.mxu0 0.0
        %2082 = vmatpush1.msra.mxu0 0.0
        %2083 = vmatprep.subr.mxu0 0.0
        %2084 = vmatpush1.msra.mxu0 0.0
        %2085 = vmatprep.subr.mxu0 0.0
        %2086 = vmatpush1.msra.mxu0 0.0
        %2087 = vmatprep.subr.mxu0 0.0
        %2088 = vmatpush1.msra.mxu0 0.0
        %2089 = vmatprep.subr.mxu0 0.0
        %2090 = vmatpush1.msra.mxu0 0.0
        %2091 = vmatprep.subr.mxu0 0.0
        %2092 = vmatpush1.msra.mxu0 0.0
        %2093 = vmatprep.subr.mxu0 0.0
        %2094 = vmatpush1.msra.mxu0 0.0
        %2095 = vmatprep.subr.mxu0 0.0
        %2096 = vmatpush1.msra.mxu0 0.0
        %2097 = vmatprep.subr.mxu0 0.0
        %2098 = vmatpush1.msra.mxu0 0.0
        %2099 = vmatprep.subr.mxu0 0.0
        %2100 = vmatpush1.msra.mxu0 0.0
        %2101 = vmatprep.subr.mxu0 0.0
        %2102 = vmatpush1.msra.mxu0 0.0
        %2103 = vmatprep.subr.mxu0 0.0
        %2104 = vmatpush1.msra.mxu0 0.0
        %2105 = vmatprep.subr.mxu0 0.0
        %2106 = vmatpush1.msra.mxu0 0.0
        %2107 = vmatprep.subr.mxu0 0.0
        %2108 = vmatpush1.msra.mxu0 0.0
        %2109 = vmatprep.subr.mxu0 0.0
        %2110 = vmatpush1.msra.mxu0 0.0
        %2111 = vmatprep.subr.mxu0 0.0
        %2112 = vmatpush1.msra.mxu0 0.0
        %2113 = vmatprep.subr.mxu0 0.0
        %2114 = vmatpush1.msra.mxu0 0.0
        %2115 = vmatprep.subr.mxu0 0.0
        %2116 = vmatpush1.msra.mxu0 0.0
        %2117 = vmatprep.subr.mxu0 0.0
        %2118 = vmatpush1.msra.mxu0 0.0
        %2119 = vmatprep.subr.mxu0 0.0
        %2120 = vmatpush1.msra.mxu0 0.0
        %2121 = vmatprep.subr.mxu0 0.0
        %2122 = vmatpush1.msra.mxu0 0.0
        %2123 = vmatprep.subr.mxu0 0.0
        %2124 = vmatpush1.msra.mxu0 0.0
        %2125 = vmatprep.subr.mxu0 0.0
        %2126 = vmatpush1.msra.mxu0 0.0
        %2127 = vmatprep.mubr.f32.mxu0 0.0
        %2128 = vmatmul.mubr.f32.gmra.mrb[0].mxu0 %v2061
        %v2129 = vpop.f32.mrb[0].mxu0
        %v2130 = vadd.f32 0.0, %v2129
        %v2131 = vpop.f32.mrb[0].mxu0
        %2132 = vdwg.mxu0
        %v2134 = vsel %vm357, %v2130, 0
        %2136 = vmatprep.subr.mxu0 0.0
        %2137 = vmatpush1.msra.mxu0 %v1756
        %2138 = vmatprep.subr.mxu0 0.0
        %2139 = vmatpush1.msra.mxu0 %v1757
        %2140 = vmatprep.subr.mxu0 0.0
        %2141 = vmatpush1.msra.mxu0 %v1758
        %2142 = vmatprep.subr.mxu0 0.0
        %2143 = vmatpush1.msra.mxu0 %v1759
        %2144 = vmatprep.subr.mxu0 0.0
        %2145 = vmatpush1.msra.mxu0 0.0
        %2146 = vmatprep.subr.mxu0 0.0
        %2147 = vmatpush1.msra.mxu0 0.0
        %2148 = vmatprep.subr.mxu0 0.0
        %2149 = vmatpush1.msra.mxu0 0.0
        %2150 = vmatprep.subr.mxu0 0.0
        %2151 = vmatpush1.msra.mxu0 0.0
        %2152 = vmatprep.subr.mxu0 0.0
        %2153 = vmatpush1.msra.mxu0 0.0
        %2154 = vmatprep.subr.mxu0 0.0
        %2155 = vmatpush1.msra.mxu0 0.0
        %2156 = vmatprep.subr.mxu0 0.0
        %2157 = vmatpush1.msra.mxu0 0.0
        %2158 = vmatprep.subr.mxu0 0.0
        %2159 = vmatpush1.msra.mxu0 0.0
        %2160 = vmatprep.subr.mxu0 0.0
        %2161 = vmatpush1.msra.mxu0 0.0
        %2162 = vmatprep.subr.mxu0 0.0
        %2163 = vmatpush1.msra.mxu0 0.0
        %2164 = vmatprep.subr.mxu0 0.0
        %2165 = vmatpush1.msra.mxu0 0.0
        %2166 = vmatprep.subr.mxu0 0.0
        %2167 = vmatpush1.msra.mxu0 0.0
        %2168 = vmatprep.subr.mxu0 0.0
        %2169 = vmatpush1.msra.mxu0 0.0
        %2170 = vmatprep.subr.mxu0 0.0
        %2171 = vmatpush1.msra.mxu0 0.0
        %2172 = vmatprep.subr.mxu0 0.0
        %2173 = vmatpush1.msra.mxu0 0.0
        %2174 = vmatprep.subr.mxu0 0.0
        %2175 = vmatpush1.msra.mxu0 0.0
        %2176 = vmatprep.subr.mxu0 0.0
        %2177 = vmatpush1.msra.mxu0 0.0
        %2178 = vmatprep.subr.mxu0 0.0
        %2179 = vmatpush1.msra.mxu0 0.0
        %2180 = vmatprep.subr.mxu0 0.0
        %2181 = vmatpush1.msra.mxu0 0.0
        %2182 = vmatprep.subr.mxu0 0.0
        %2183 = vmatpush1.msra.mxu0 0.0
        %2184 = vmatprep.subr.mxu0 0.0
        %2185 = vmatpush1.msra.mxu0 0.0
        %2186 = vmatprep.subr.mxu0 0.0
        %2187 = vmatpush1.msra.mxu0 0.0
        %2188 = vmatprep.subr.mxu0 0.0
        %2189 = vmatpush1.msra.mxu0 0.0
        %2190 = vmatprep.subr.mxu0 0.0
        %2191 = vmatpush1.msra.mxu0 0.0
        %2192 = vmatprep.subr.mxu0 0.0
        %2193 = vmatpush1.msra.mxu0 0.0
        %2194 = vmatprep.subr.mxu0 0.0
        %2195 = vmatpush1.msra.mxu0 0.0
        %2196 = vmatprep.subr.mxu0 0.0
        %2197 = vmatpush1.msra.mxu0 0.0
        %2198 = vmatprep.subr.mxu0 0.0
        %2199 = vmatpush1.msra.mxu0 0.0
        %2200 = vmatprep.mubr.f32.mxu0 0.0
        %2201 = vmatmul.mubr.f32.gmra.mrb[0].mxu0 %v2134
        %v2202 = vpop.f32.mrb[0].mxu0
        %v2203 = vadd.f32 0.0, %v2202
        %v2204 = vpop.f32.mrb[0].mxu0
        %2205 = vdwg.mxu0
        %v2206 = vadd.f32 %v1739, %v2203
        %2207 = vst.msk [vmem:[%s339] sm:$0xff] %vm357, %v2206
        %s2208 = sand.u32 %s165, 1
        %s2209 = scalar_lea.sflag [#allocation4], %s2208
        %s2210 = sand.u32 %s165, 1
        %s2211 = smul.addr %s2210, 8
        %s2212 = scalar_lea.vmem [#allocation13], %s2211
        // Predicated region
        $region69: #{tpu_custom_call.1} parent=43 // pred_check
          %p2213 = pneg %p175
        $region70: #{tpu_custom_call.1} parent=43 // pred_check_branch
          %2215 = sbr.rel (%p2213) target = $region72
        $region71: #{tpu_custom_call.1} parent=43 // pred_region
          %s2217 = ssub.s32 128, 128
          %2218 = vsyncadd %s2209, %s2217
          %s2219 = smul.addr %s26, 128
          %s2220 = scalar_lea.hbm %s6, %s2219
          %s2222 = sshll.u32 %s2212, 4
          %s2223 = int_to_ptr.vmem [resolvable:$true] %s2222
          %2225 = dma.vmem_to_hbm [thread:$0]  %s2223, 128, %s2220, %s2209
        $region72: #{tpu_custom_call.1} parent=43 // pred_fallthru
          _
      $region44: #{tpu_custom_call.1} parent=5 // pred_fallthru
        _
      %p2226 = scmp.le.s32.totalorder 2, %s21
      // Predicated region
      $region73: #{tpu_custom_call.1} parent=5 // pred_check
        %p2227 = pneg %p2226
      $region74: #{tpu_custom_call.1} parent=5 // pred_check_branch
        %2229 = sbr.rel (%p2227) target = $region76
      $region75: #{tpu_custom_call.1} parent=5 // pred_region
        %s2230 = ssub.s32 %s21, 2
        // Predicated region
        $region77: #{tpu_custom_call.1} parent=75 // pred_check
          %p2231 = pneg %p181
        $region78: #{tpu_custom_call.1} parent=75 // pred_check_branch
          %2233 = sbr.rel (%p2231) target = $region80
        $region79: #{tpu_custom_call.1} parent=75 // pred_region
          %s2234 = sand.u32 %s166, 1
          %s2235 = scalar_lea.sflag [#allocation4], %s2234
          %s2236 = sand.u32 %s166, 1
          %s2237 = smul.addr %s2236, 8
          %s2238 = scalar_lea.vmem [#allocation13], %s2237
          %2239 = dma.done %s2235, 128
        $region80: #{tpu_custom_call.1} parent=75 // pred_fallthru
          _
      $region76: #{tpu_custom_call.1} parent=5 // pred_fallthru
        _
    $region6: #{tpu_custom_call.1} parent=1 // loop_footer
      %s25 = sadd.s32 1, %s21
    $region7: #{tpu_custom_call.1} parent=1 // loop_footer_branch
      %20 = sbr.rel target = $region3
    $region8: #{tpu_custom_call.1} parent=1 // loop_exit
      _
    %2240 = vsyncpa [#allocation3], 1
    %s2241 = scalar_lea.sflag [#allocation3], 1
    %2242 = vsyncpa %s2241, 1
    %2243 = vsyncpa [#allocation6], 1
    %2244 = vsyncpa [#allocation9], 1
    %2245 = vsyncpa [#allocation12], 1
    %2246 = vsyncpa [#allocation4], 1
    %s2247 = scalar_lea.sflag [#allocation4], 1
    %2248 = vsyncpa %s2247, 1

</llo_original>
